<compile_context>
chip_gen: v6e
topology: v6e:2x2x1
jax: 0.10.0
libtpu: 0.0.40
codegen_flags: <defaults>
</compile_context>

<pallas_src>
from functools import partial

import jax
import jax.numpy as jnp
import numpy as np
from jax.experimental import pallas as pl
from jax.experimental.pallas import tpu as pltpu


# ----------------------------------------------------------------------------
# Pallas kernel: one elo-aware transformer layer per depth grid step.
# ----------------------------------------------------------------------------
def transformer_layer_kernel(
    x_ref,        # (BB, n, dim)          f32   input sequence (read at depth step 0)
    elo_ref,      # (BB, elo_feat)        f32   concatenated elo embedding
    wqkv_ref,     # (1, dim, 3*inner)     bf16  to_qkv weight (no bias)
    welo_ref,     # (1, elo_feat, inner)  bf16  elo_query weight (no bias)
    wo_ref,       # (1, inner, dim)       bf16  to_out weight
    w1_ref,       # (1, dim, mlp)         bf16  ff first linear weight
    w2_ref,       # (1, mlp, dim)         bf16  ff second linear weight
    vec_ref,      # (1, 8, dim)           f32   packed per-layer vectors (see rows below)
    fin_ref,      # (2, dim)              f32   final LayerNorm gamma/beta
    o_ref,        # (BB, n, dim)          f32   residual stream (VMEM-resident over depth)
    *,
    heads: int,
    dim_head: int,
    compute_dtype,
):
    d = pl.program_id(1)
    n_layers = pl.num_programs(1)

    # Initialize the residual stream from the input at the first layer.
    @pl.when(d == 0)
    def _():
        o_ref[...] = x_ref[...]

    BB, n, dim = o_ref.shape
    inner = heads * dim_head
    scale = dim_head ** -0.5
    eps = 1e-5                       # torch.nn.LayerNorm default
    cdt = compute_dtype

    # Packed per-layer vectors: one DMA per layer instead of ~8 tiny ones.
    vecs = vec_ref[0]                # (8, dim) f32
    ln_a_g, ln_a_b = vecs[0:1], vecs[1:2]
    b_o = vecs[2:3]
    ln_f_g, ln_f_b = vecs[3:4], vecs[4:5]
    b1, b2 = vecs[5:6], vecs[6:7]    # b1 row valid because mlp_dim == dim (MAIA2)

    def layernorm(v, g, b):          # f32 in / f32 out
        mu = jnp.mean(v, axis=-1, keepdims=True)
        var = jnp.mean(jnp.square(v - mu), axis=-1, keepdims=True)
        return (v - mu) * jax.lax.rsqrt(var + eps) * g + b

    # Residual stream as a lane-dense 2D slab (BB*n, dim); n % 8 == 0 and
    # dim % 128 == 0 are asserted in the wrapper so this reshape is layout-preserving.
    x2 = o_ref[...].reshape(BB * n, dim)

    # ---------------- Elo-aware attention (pre-norm, residual) -----------------
    h = layernorm(x2, ln_a_g, ln_a_b).astype(cdt)
    qkv = jnp.dot(h, wqkv_ref[0], preferred_element_type=jnp.float32)   # (BB*n, 3*inner)
    elo_b = jnp.dot(elo_ref[...].astype(cdt), welo_ref[0],
                    preferred_element_type=jnp.float32)                 # (BB, inner)

    # Split qkv ONCE into q/k/v slabs (128-lane-aligned inner boundaries); add the
    # broadcast elo bias and fold the 1/sqrt(dh) scale into q for all heads in one
    # op; cast everything to bf16 once.  The head loop below only slices bf16 slabs.
    qkv = qkv.reshape(BB, n, 3 * inner)
    q_all = ((qkv[:, :, :inner] + elo_b[:, None, :]) * scale).astype(cdt)
    k_all = qkv[:, :, inner:2 * inner].astype(cdt)
    v_all = qkv[:, :, 2 * inner:].astype(cdt)

    # Static head loop: the n x n attention math is ~1% of the layer FLOPs (n is tiny
    # in MAIA2).  Batched-over-batch einsums, no explicit transposes.  A single
    # (batch, head)-batched dot_general is not used because Mosaic's dot_general
    # lowering supports only one batch dimension.
    ctx_heads = []
    for hh in range(heads):
        lo = hh * dim_head
        qh = q_all[:, :, lo:lo + dim_head]                              # (BB, n, dh) bf16
        kh = k_all[:, :, lo:lo + dim_head]
        vh = v_all[:, :, lo:lo + dim_head]

        dots = jnp.einsum("bqd,bkd->bqk", qh, kh,
                          preferred_element_type=jnp.float32)           # (BB, n, n)
        m = jnp.max(dots, axis=-1, keepdims=True)
        e = jnp.exp(dots - m)
        p = (e * pl.reciprocal(jnp.sum(e, axis=-1, keepdims=True),
                               approx=True)).astype(cdt)
        ctx_heads.append(jnp.einsum("bqk,bkd->bqd", p, vh,
                                    preferred_element_type=jnp.float32))  # (BB, n, dh)

    # One full-K output projection (instead of `heads` partial-depth K=dim_head dots).
    ctx = jnp.concatenate(ctx_heads, axis=-1).reshape(BB * n, inner).astype(cdt)
    x2 = x2 + jnp.dot(ctx, wo_ref[0], preferred_element_type=jnp.float32) + b_o

    # ---------------- FeedForward block (pre-norm, residual) -------------------
    hf = layernorm(x2, ln_f_g, ln_f_b).astype(cdt)
    h1 = jnp.dot(hf, w1_ref[0], preferred_element_type=jnp.float32) + b1
    # exact (erf-based) GELU, matching torch.nn.GELU() default
    h1 = 0.5 * h1 * (1.0 + jax.lax.erf(h1 * (2.0 ** -0.5)))
    x2 = x2 + jnp.dot(h1.astype(cdt), w2_ref[0],
                      preferred_element_type=jnp.float32) + b2

    # ---------------- Write back / fused final LayerNorm -----------------------
    @pl.when(d < n_layers - 1)
    def _():
        o_ref[...] = x2.reshape(BB, n, dim)

    @pl.when(d == n_layers - 1)
    def _():
        fin = fin_ref[...]
        o_ref[...] = layernorm(x2, fin[0:1], fin[1:2]).reshape(BB, n, dim)


# ----------------------------------------------------------------------------
# One-off host-side parameter prep: pre-cast big matrices to bf16 (halves HBM
# weight traffic with zero per-call cost) and pack the per-layer vectors.
# TODO(synk): int8 weights (per-output-channel scales) on v5e/v6e, fp8 e4m3 on v7x,
#             would halve weight bytes again on the HBM-bound configuration.
# ----------------------------------------------------------------------------
def pack_params(params, compute_dtype=jnp.bfloat16):
    depth, _, dim = params["ln_a_g"].shape
    mlp_dim = params["w1"].shape[-1]
    # MAIA2 always uses mlp_dim == dim_vit; the packed-bias layout relies on it.
    assert mlp_dim == dim, "packed per-layer vector slab assumes mlp_dim == dim"
    vec = jnp.concatenate(
        [params["ln_a_g"], params["ln_a_b"], params["b_o"],
         params["ln_f_g"], params["ln_f_b"], params["b1"], params["b2"],
         jnp.zeros((depth, 1, dim), jnp.float32)],          # pad to 8 sublanes
        axis=1)                                             # (depth, 8, dim)
    fin = jnp.concatenate([params["fin_g"], params["fin_b"]], axis=0)   # (2, dim)
    return {
        "w_qkv": params["w_qkv"].astype(compute_dtype),
        "w_elo": params["w_elo"].astype(compute_dtype),
        "w_o":   params["w_o"].astype(compute_dtype),
        "w1":    params["w1"].astype(compute_dtype),
        "w2":    params["w2"].astype(compute_dtype),
        "vec":   vec,
        "fin":   fin,
    }


# ----------------------------------------------------------------------------
# Wrapper
# ----------------------------------------------------------------------------
def maia2_vit_transformer(x, elo_emb, packed, *, heads, dim_head,
                          batch_block=None, compute_dtype=jnp.bfloat16):
    # Residual stream / LayerNorm accumulation is forced to f32 regardless of the
    # caller's activation dtype.
    x = x.astype(jnp.float32)
    elo_emb = elo_emb.astype(jnp.float32)

    batch, n, dim = x.shape
    depth = packed["w_qkv"].shape[0]
    inner = heads * dim_head
    mlp_dim = packed["w1"].shape[-1]
    elo_feat = elo_emb.shape[-1]

    # Lane-dense residual stores / layout-preserving (BB,n,dim)->(BB*n,dim) reshape.
    # TODO(synk): pad n to a multiple of 8 / dim to a multiple of 128 if violated.
    assert n % 8 == 0 and dim % 128 == 0, "n must be %8==0 and dim %128==0"

    # Default: fold the whole batch into the block (weights stream once per layer,
    # one TensorCore does the work).  Only pass batch_block = batch // 2 on v7x when
    # the kernel is actually MXU-bound (roughly batch*n >= ~600 rows); splitting a
    # weight-HBM-bound kernel across both cores doubles weight traffic for nothing.
    if batch_block is None:
        batch_block = batch
    assert batch % batch_block == 0
    n_bb = batch // batch_block

    # VMEM budget: ~96 MiB on 128 MiB parts (v5e/v6e), ~48 MiB on 64 MiB v7x.
    try:
        vmem_cap = int(pltpu.get_tpu_info().vmem_capacity_bytes)
    except Exception:
        vmem_cap = 64 * 1024 * 1024
    vmem_limit = min(100 * 1024 * 1024, vmem_cap * 3 // 4)
    # Deeper weight pipelining only where the big-VMEM parts afford it.
    weight_buffers = 3 if vmem_cap >= 100 * 1024 * 1024 else 2

    def layer_mat(r, c, deep=True):   # (depth, r, c) stacked matrix param
        kwargs = {}
        if deep and weight_buffers != 2:
            kwargs["pipeline_mode"] = pl.Buffered(weight_buffers)
        return pl.BlockSpec((1, r, c), lambda b, d: (d, 0, 0), **kwargs)

    in_specs = [
        pl.BlockSpec((batch_block, n, dim), lambda b, d: (b, 0, 0)),   # x
        pl.BlockSpec((batch_block, elo_feat), lambda b, d: (b, 0)),    # elo_emb
        layer_mat(dim, 3 * inner),                                     # w_qkv
        layer_mat(elo_feat, inner, deep=False),                        # w_elo (small)
        layer_mat(inner, dim),                                         # w_o
        layer_mat(dim, mlp_dim),                                       # w1
        layer_mat(mlp_dim, dim),                                       # w2
        pl.BlockSpec((1, 8, dim), lambda b, d: (d, 0, 0)),             # packed vectors
        pl.BlockSpec((2, dim), lambda b, d: (0, 0)),                   # final LN g/b
    ]
    # Output block index depends ONLY on the (outer) batch-block coordinate, so the
    # residual stream stays VMEM-resident across the inner 'arbitrary' depth axis.
    out_specs = pl.BlockSpec((batch_block, n, dim), lambda b, d: (b, 0, 0))

    kernel = partial(transformer_layer_kernel, heads=heads, dim_head=dim_head,
                     compute_dtype=compute_dtype)
    return pl.pallas_call(
        kernel,
        out_shape=jax.ShapeDtypeStruct((batch, n, dim), jnp.float32),
        grid=(n_bb, depth),
        in_specs=in_specs,
        out_specs=out_specs,
        input_output_aliases={0: 0},          # x buffer reused for the residual output
        compiler_params=pltpu.CompilerParams(
            dimension_semantics=("parallel", "arbitrary"),
            vmem_limit_bytes=vmem_limit,
        ),
    )(x, elo_emb, packed["w_qkv"], packed["w_elo"], packed["w_o"],
      packed["w1"], packed["w2"], packed["vec"], packed["fin"])


# ----------------------------------------------------------------------------
# Pure-JAX f32 reference (mirrors the PyTorch Transformer/EloAwareAttention exactly).
# ----------------------------------------------------------------------------
def reference_forward(x, elo_emb, params, *, heads, dim_head):
    depth = params["w_qkv"].shape[0]
    inner = heads * dim_head
    eps = 1e-5

    def ln(v, g, b):
        mu = v.mean(-1, keepdims=True)
        var = ((v - mu) ** 2).mean(-1, keepdims=True)
        return (v - mu) / jnp.sqrt(var + eps) * g + b

    b_, n, dim = x.shape
    for d in range(depth):
        # elo-aware attention
        h = ln(x, params["ln_a_g"][d], params["ln_a_b"][d])
        qkv = h @ params["w_qkv"][d]
        q = qkv[..., :inner].reshape(b_, n, heads, dim_head).transpose(0, 2, 1, 3)
        k = qkv[..., inner:2 * inner].reshape(b_, n, heads, dim_head).transpose(0, 2, 1, 3)
        v = qkv[..., 2 * inner:].reshape(b_, n, heads, dim_head).transpose(0, 2, 1, 3)
        elo_eff = (elo_emb @ params["w_elo"][d]).reshape(b_, heads, 1, dim_head)
        q = q + elo_eff
        dots = jnp.einsum("bhqd,bhkd->bhqk", q, k) * dim_head ** -0.5
        attn = jax.nn.softmax(dots, axis=-1)
        out = jnp.einsum("bhqk,bhkd->bhqd", attn, v)
        out = out.transpose(0, 2, 1, 3).reshape(b_, n, inner)
        x = x + out @ params["w_o"][d] + params["b_o"][d]
        # feed-forward
        h = ln(x, params["ln_f_g"][d], params["ln_f_b"][d])
        h1 = h @ params["w1"][d] + params["b1"][d]
        h1 = jax.nn.gelu(h1, approximate=False)
        x = x + h1 @ params["w2"][d] + params["b2"][d]
    return ln(x, params["fin_g"], params["fin_b"])


# ----------------------------------------------------------------------------
# Deterministic parameter init (synthetic weights; shapes match the module).
# ----------------------------------------------------------------------------
def init_params(key, *, dim, depth, heads, dim_head, mlp_dim, elo_feat):
    inner = heads * dim_head
    ks = jax.random.split(key, 13)
    f32 = jnp.float32
    return {
        "ln_a_g": 1.0 + 0.1 * jax.random.normal(ks[0], (depth, 1, dim), f32),
        "ln_a_b": 0.1 * jax.random.normal(ks[1], (depth, 1, dim), f32),
        "w_qkv": 0.1 * jax.random.normal(ks[2], (depth, dim, 3 * inner), f32),
        "w_elo": 0.1 * jax.random.normal(ks[3], (depth, elo_feat, inner), f32),
        "w_o": 0.1 * jax.random.normal(ks[4], (depth, inner, dim), f32),
        "b_o": 0.01 * jax.random.normal(ks[5], (depth, 1, dim), f32),
        "ln_f_g": 1.0 + 0.1 * jax.random.normal(ks[6], (depth, 1, dim), f32),
        "ln_f_b": 0.1 * jax.random.normal(ks[7], (depth, 1, dim), f32),
        "w1": 0.1 * jax.random.normal(ks[8], (depth, dim, mlp_dim), f32),
        "b1": 0.01 * jax.random.normal(ks[9], (depth, 1, mlp_dim), f32),
        "w2": 0.1 * jax.random.normal(ks[10], (depth, mlp_dim, dim), f32),
        "b2": 0.01 * jax.random.normal(ks[11], (depth, 1, dim), f32),
        "fin_g": 1.0 + 0.1 * jax.random.normal(ks[12], (1, dim), f32),
        "fin_b": jnp.zeros((1, dim), f32),
    }


if __name__ == "__main__":
    # Small shapes consistent with MAIA2: x is (batch, vit_length, dim_vit),
    # mlp_dim == dim_vit, elo feature = 2 * elo_dim.  dim is a multiple of 128 so the
    # residual-stream stores are lane-dense.
    batch, n, dim = 2, 8, 128
    depth, heads, dim_head = 2, 4, 32
    mlp_dim = dim
    elo_feat = 32

    key = jax.random.PRNGKey(0)
    kx, ke, kp = jax.random.split(key, 3)
    x = jax.random.normal(kx, (batch, n, dim), jnp.float32)
    elo_emb = jax.random.normal(ke, (batch, elo_feat), jnp.float32)
    params = init_params(kp, dim=dim, depth=depth, heads=heads,
                         dim_head=dim_head, mlp_dim=mlp_dim, elo_feat=elo_feat)

    # The kernel stores the big matrices in bf16; use the same (bf16-rounded) weights
    # in the f32 reference so the comparison isolates kernel arithmetic.
    for kname in ("w_qkv", "w_elo", "w_o", "w1", "w2"):
        params[kname] = params[kname].astype(jnp.bfloat16).astype(jnp.float32)

    packed = pack_params(params)   # one-off host-side prep (bf16 pre-cast + packing)

    # Compute the reference BEFORE the kernel call: x is aliased/donated to the
    # kernel's output buffer.
    ref = jax.block_until_ready(
        reference_forward(x, elo_emb, params, heads=heads, dim_head=dim_head))

    out = maia2_vit_transformer(x, elo_emb, packed, heads=heads, dim_head=dim_head)
    out = jax.block_until_ready(out)

    # bf16 MXU operands + approx reciprocal vs full-f32 reference -> loose-ish tol.
    np.testing.assert_allclose(np.asarray(out), np.asarray(ref),
                               rtol=5e-2, atol=5e-2)
    print("KERNEL_OK")
</pallas_src>

<mosaic_0001>
module attributes {stable_mosaic.version = 11 : i64} {
  func.func @transformer_layer_kernel(%arg0: i32, %arg1: i32, %arg2: memref<2x8x128xf32, #tpu.memory_space<vmem>>, %arg3: memref<2x32xf32, #tpu.memory_space<vmem>>, %arg4: memref<1x128x384xbf16, #tpu.memory_space<vmem>>, %arg5: memref<1x32x128xbf16, #tpu.memory_space<vmem>>, %arg6: memref<1x128x128xbf16, #tpu.memory_space<vmem>>, %arg7: memref<1x128x128xbf16, #tpu.memory_space<vmem>>, %arg8: memref<1x128x128xbf16, #tpu.memory_space<vmem>>, %arg9: memref<1x8x128xf32, #tpu.memory_space<vmem>>, %arg10: memref<2x128xf32, #tpu.memory_space<vmem>>, %arg11: memref<2x8x128xf32, #tpu.memory_space<vmem>>) attributes {dimension_semantics = [#tpu.dimension_semantics<parallel>, #tpu.dimension_semantics<arbitrary>], iteration_bounds = array<i64: 1, 2>, scalar_prefetch = 0 : i64, scratch_operands = 0 : i64, tpu.core_type = #tpu.core_type<tc>, window_params = [{transform_indices = @transform_0, window_bounds = array<i64: 2, 8, 128>}, {transform_indices = @transform_1, window_bounds = array<i64: 2, 32>}, {transform_indices = @transform_2, window_bounds = array<i64: 1, 128, 384>}, {transform_indices = @transform_3, window_bounds = array<i64: 1, 32, 128>}, {transform_indices = @transform_4, window_bounds = array<i64: 1, 128, 128>}, {transform_indices = @transform_5, window_bounds = array<i64: 1, 128, 128>}, {transform_indices = @transform_6, window_bounds = array<i64: 1, 128, 128>}, {transform_indices = @transform_7, window_bounds = array<i64: 1, 8, 128>}, {pipeline_mode = #tpu.pipeline_mode<synchronous>, transform_indices = @transform_8, window_bounds = array<i64: 2, 128>}, {transform_indices = @transform_9, window_bounds = array<i64: 2, 8, 128>}]} {
    %c0_i32 = arith.constant 0 : i32
    %0 = arith.cmpi eq, %arg1, %c0_i32 : i32
    %1 = arith.extui %0 : i1 to i32
    %c0_i32_0 = arith.constant 0 : i32
    %2 = arith.cmpi ne, %1, %c0_i32_0 : i32
    scf.if %2 {
      %c0_60 = arith.constant 0 : index
      %c0_61 = arith.constant 0 : index
      %c0_62 = arith.constant 0 : index
      %179 = vector.load %arg2[%c0_60, %c0_61, %c0_62] : memref<2x8x128xf32, #tpu.memory_space<vmem>>, vector<2x8x128xf32>
      %c0_63 = arith.constant 0 : index
      %c0_64 = arith.constant 0 : index
      %c0_65 = arith.constant 0 : index
      %180 = vector.load %arg11[%c0_63, %c0_64, %c0_65] : memref<2x8x128xf32, #tpu.memory_space<vmem>>, vector<2x8x128xf32>
      tpu.vector_store %arg11[%c0_63, %c0_64, %c0_65], %179 {strides = array<i32>} : memref<2x8x128xf32, #tpu.memory_space<vmem>>, vector<2x8x128xf32>,
    } else {
    }
    %c0 = arith.constant 0 : index
    %c0_1 = arith.constant 0 : index
    %c0_2 = arith.constant 0 : index
    %3 = vector.load %arg9[%c0, %c0_1, %c0_2] : memref<1x8x128xf32, #tpu.memory_space<vmem>>, vector<1x8x128xf32>
    %4 = vector.shape_cast %3 : vector<1x8x128xf32> to vector<8x128xf32>
    %5 = vector.extract_strided_slice %4 {offsets = [0, 0], sizes = [1, 128], strides = [1, 1]} : vector<8x128xf32> to vector<1x128xf32>
    %6 = vector.extract_strided_slice %4 {offsets = [1, 0], sizes = [1, 128], strides = [1, 1]} : vector<8x128xf32> to vector<1x128xf32>
    %7 = vector.extract_strided_slice %4 {offsets = [2, 0], sizes = [1, 128], strides = [1, 1]} : vector<8x128xf32> to vector<1x128xf32>
    %8 = vector.extract_strided_slice %4 {offsets = [3, 0], sizes = [1, 128], strides = [1, 1]} : vector<8x128xf32> to vector<1x128xf32>
    %9 = vector.extract_strided_slice %4 {offsets = [4, 0], sizes = [1, 128], strides = [1, 1]} : vector<8x128xf32> to vector<1x128xf32>
    %10 = vector.extract_strided_slice %4 {offsets = [5, 0], sizes = [1, 128], strides = [1, 1]} : vector<8x128xf32> to vector<1x128xf32>
    %11 = vector.extract_strided_slice %4 {offsets = [6, 0], sizes = [1, 128], strides = [1, 1]} : vector<8x128xf32> to vector<1x128xf32>
    %c0_3 = arith.constant 0 : index
    %c0_4 = arith.constant 0 : index
    %c0_5 = arith.constant 0 : index
    %12 = vector.load %arg11[%c0_3, %c0_4, %c0_5] : memref<2x8x128xf32, #tpu.memory_space<vmem>>, vector<2x8x128xf32>
    %13 = vector.shape_cast %12 : vector<2x8x128xf32> to vector<16x128xf32>
    %cst = arith.constant dense<0.000000e+00> : vector<16xf32>
    %14 = vector.multi_reduction <add>, %13, %cst [1] : vector<16x128xf32> to vector<16xf32>
    %15 = vector.shape_cast %14 : vector<16xf32> to vector<16x1xf32>
    %cst_6 = arith.constant 1.280000e+02 : f32
    %16 = vector.broadcast %cst_6 : f32 to vector<16x1xf32>
    %17 = arith.divf %15, %16 : vector<16x1xf32>
    %18 = vector.broadcast %17 : vector<16x1xf32> to vector<16x128xf32>
    %19 = arith.subf %13, %18 : vector<16x128xf32>
    %20 = arith.mulf %19, %19 : vector<16x128xf32>
    %cst_7 = arith.constant dense<0.000000e+00> : vector<16xf32>
    %21 = vector.multi_reduction <add>, %20, %cst_7 [1] : vector<16x128xf32> to vector<16xf32>
    %22 = vector.shape_cast %21 : vector<16xf32> to vector<16x1xf32>
    %cst_8 = arith.constant 1.280000e+02 : f32
    %23 = vector.broadcast %cst_8 : f32 to vector<16x1xf32>
    %24 = arith.divf %22, %23 : vector<16x1xf32>
    %25 = vector.broadcast %17 : vector<16x1xf32> to vector<16x128xf32>
    %26 = arith.subf %13, %25 : vector<16x128xf32>
    %cst_9 = arith.constant 9.99999974E-6 : f32
    %27 = vector.broadcast %cst_9 : f32 to vector<16x1xf32>
    %28 = arith.addf %24, %27 : vector<16x1xf32>
    %29 = math.rsqrt %28 : vector<16x1xf32>
    %30 = vector.broadcast %29 : vector<16x1xf32> to vector<16x128xf32>
    %31 = arith.mulf %26, %30 : vector<16x128xf32>
    %32 = vector.broadcast %5 : vector<1x128xf32> to vector<16x128xf32>
    %33 = arith.mulf %31, %32 : vector<16x128xf32>
    %34 = vector.broadcast %6 : vector<1x128xf32> to vector<16x128xf32>
    %35 = arith.addf %33, %34 : vector<16x128xf32>
    %36 = arith.truncf %35 : vector<16x128xf32> to vector<16x128xbf16>
    %c0_10 = arith.constant 0 : index
    %c0_11 = arith.constant 0 : index
    %c0_12 = arith.constant 0 : index
    %37 = vector.load %arg4[%c0_10, %c0_11, %c0_12] : memref<1x128x384xbf16, #tpu.memory_space<vmem>>, vector<1x128x384xbf16>
    %38 = vector.shape_cast %37 : vector<1x128x384xbf16> to vector<128x384xbf16>
    %cst_13 = arith.constant dense<0.000000e+00> : vector<16x384xf32>
    %39 = tpu.matmul %36, %38, %cst_13 {dimension_numbers = #tpu.dot_dimension_numbers<[1], [0], [0], [1], [0, 0, 1, 1], [], []>} : vector<16x128xbf16>, vector<128x384xbf16>, vector<16x384xf32> -> vector<16x384xf32>
    %c0_14 = arith.constant 0 : index
    %c0_15 = arith.constant 0 : index
    %40 = vector.load %arg3[%c0_14, %c0_15] : memref<2x32xf32, #tpu.memory_space<vmem>>, vector<2x32xf32>
    %41 = arith.truncf %40 : vector<2x32xf32> to vector<2x32xbf16>
    %c0_16 = arith.constant 0 : index
    %c0_17 = arith.constant 0 : index
    %c0_18 = arith.constant 0 : index
    %42 = vector.load %arg5[%c0_16, %c0_17, %c0_18] : memref<1x32x128xbf16, #tpu.memory_space<vmem>>, vector<1x32x128xbf16>
    %43 = vector.shape_cast %42 : vector<1x32x128xbf16> to vector<32x128xbf16>
    %cst_19 = arith.constant dense<0.000000e+00> : vector<2x128xf32>
    %44 = tpu.matmul %41, %43, %cst_19 {dimension_numbers = #tpu.dot_dimension_numbers<[1], [0], [0], [1], [0, 0, 1, 1], [], []>} : vector<2x32xbf16>, vector<32x128xbf16>, vector<2x128xf32> -> vector<2x128xf32>
    %45 = vector.shape_cast %39 : vector<16x384xf32> to vector<2x8x384xf32>
    %46 = vector.extract_strided_slice %45 {offsets = [0, 0, 0], sizes = [2, 8, 128], strides = [1, 1, 1]} : vector<2x8x384xf32> to vector<2x8x128xf32>
    %47 = vector.shape_cast %44 : vector<2x128xf32> to vector<2x1x128xf32>
    %48 = vector.broadcast %47 : vector<2x1x128xf32> to vector<2x8x128xf32>
    %49 = arith.addf %46, %48 : vector<2x8x128xf32>
    %cst_20 = arith.constant 0.176776692 : f32
    %50 = vector.broadcast %cst_20 : f32 to vector<2x8x128xf32>
    %51 = arith.mulf %49, %50 : vector<2x8x128xf32>
    %52 = arith.truncf %51 : vector<2x8x128xf32> to vector<2x8x128xbf16>
    %53 = vector.extract_strided_slice %45 {offsets = [0, 0, 128], sizes = [2, 8, 128], strides = [1, 1, 1]} : vector<2x8x384xf32> to vector<2x8x128xf32>
    %54 = arith.truncf %53 : vector<2x8x128xf32> to vector<2x8x128xbf16>
    %55 = vector.extract_strided_slice %45 {offsets = [0, 0, 256], sizes = [2, 8, 128], strides = [1, 1, 1]} : vector<2x8x384xf32> to vector<2x8x128xf32>
    %56 = arith.truncf %55 : vector<2x8x128xf32> to vector<2x8x128xbf16>
    %57 = vector.extract_strided_slice %52 {offsets = [0, 0, 0], sizes = [2, 8, 32], strides = [1, 1, 1]} : vector<2x8x128xbf16> to vector<2x8x32xbf16>
    %58 = vector.extract_strided_slice %54 {offsets = [0, 0, 0], sizes = [2, 8, 32], strides = [1, 1, 1]} : vector<2x8x128xbf16> to vector<2x8x32xbf16>
    %59 = vector.extract_strided_slice %56 {offsets = [0, 0, 0], sizes = [2, 8, 32], strides = [1, 1, 1]} : vector<2x8x128xbf16> to vector<2x8x32xbf16>
    "tpu.trace_start"() <{level = 10 : i32, message = "bqd,bkd->bqk"}> : () -> ()
    %cst_21 = arith.constant dense<0.000000e+00> : vector<2x8x8xf32>
    %60 = tpu.matmul %57, %58, %cst_21 {dimension_numbers = #tpu.dot_dimension_numbers<[2], [2], [1], [1], [0, 0, 0, 1, 1, 1], [0], [0]>} : vector<2x8x32xbf16>, vector<2x8x32xbf16>, vector<2x8x8xf32> -> vector<2x8x8xf32>
    "tpu.trace_stop"() : () -> ()
    %cst_22 = arith.constant dense<0xFF800000> : vector<2x8xf32>
    %61 = vector.multi_reduction <maximumf>, %60, %cst_22 [2] : vector<2x8x8xf32> to vector<2x8xf32>
    %62 = vector.shape_cast %61 : vector<2x8xf32> to vector<2x8x1xf32>
    %63 = vector.broadcast %62 : vector<2x8x1xf32> to vector<2x8x8xf32>
    %64 = arith.subf %60, %63 : vector<2x8x8xf32>
    %65 = math.exp %64 : vector<2x8x8xf32>
    %cst_23 = arith.constant dense<0.000000e+00> : vector<2x8xf32>
    %66 = vector.multi_reduction <add>, %65, %cst_23 [2] : vector<2x8x8xf32> to vector<2x8xf32>
    %67 = vector.shape_cast %66 : vector<2x8xf32> to vector<2x8x1xf32>
    %68 = tpu.reciprocal %67 {approx = true} : vector<2x8x1xf32> -> vector<2x8x1xf32>
    %69 = vector.broadcast %68 : vector<2x8x1xf32> to vector<2x8x8xf32>
    %70 = arith.mulf %65, %69 : vector<2x8x8xf32>
    %71 = arith.truncf %70 : vector<2x8x8xf32> to vector<2x8x8xbf16>
    "tpu.trace_start"() <{level = 10 : i32, message = "bqk,bkd->bqd"}> : () -> ()
    %cst_24 = arith.constant dense<0.000000e+00> : vector<2x8x32xf32>
    %72 = tpu.matmul %71, %59, %cst_24 {dimension_numbers = #tpu.dot_dimension_numbers<[2], [1], [1], [2], [0, 0, 0, 1, 1, 2], [0], [0]>} : vector<2x8x8xbf16>, vector<2x8x32xbf16>, vector<2x8x32xf32> -> vector<2x8x32xf32>
    "tpu.trace_stop"() : () -> ()
    %73 = vector.extract_strided_slice %52 {offsets = [0, 0, 32], sizes = [2, 8, 32], strides = [1, 1, 1]} : vector<2x8x128xbf16> to vector<2x8x32xbf16>
    %74 = vector.extract_strided_slice %54 {offsets = [0, 0, 32], sizes = [2, 8, 32], strides = [1, 1, 1]} : vector<2x8x128xbf16> to vector<2x8x32xbf16>
    %75 = vector.extract_strided_slice %56 {offsets = [0, 0, 32], sizes = [2, 8, 32], strides = [1, 1, 1]} : vector<2x8x128xbf16> to vector<2x8x32xbf16>
    "tpu.trace_start"() <{level = 10 : i32, message = "bqd,bkd->bqk"}> : () -> ()
    %cst_25 = arith.constant dense<0.000000e+00> : vector<2x8x8xf32>
    %76 = tpu.matmul %73, %74, %cst_25 {dimension_numbers = #tpu.dot_dimension_numbers<[2], [2], [1], [1], [0, 0, 0, 1, 1, 1], [0], [0]>} : vector<2x8x32xbf16>, vector<2x8x32xbf16>, vector<2x8x8xf32> -> vector<2x8x8xf32>
    "tpu.trace_stop"() : () -> ()
    %cst_26 = arith.constant dense<0xFF800000> : vector<2x8xf32>
    %77 = vector.multi_reduction <maximumf>, %76, %cst_26 [2] : vector<2x8x8xf32> to vector<2x8xf32>
    %78 = vector.shape_cast %77 : vector<2x8xf32> to vector<2x8x1xf32>
    %79 = vector.broadcast %78 : vector<2x8x1xf32> to vector<2x8x8xf32>
    %80 = arith.subf %76, %79 : vector<2x8x8xf32>
    %81 = math.exp %80 : vector<2x8x8xf32>
    %cst_27 = arith.constant dense<0.000000e+00> : vector<2x8xf32>
    %82 = vector.multi_reduction <add>, %81, %cst_27 [2] : vector<2x8x8xf32> to vector<2x8xf32>
    %83 = vector.shape_cast %82 : vector<2x8xf32> to vector<2x8x1xf32>
    %84 = tpu.reciprocal %83 {approx = true} : vector<2x8x1xf32> -> vector<2x8x1xf32>
    %85 = vector.broadcast %84 : vector<2x8x1xf32> to vector<2x8x8xf32>
    %86 = arith.mulf %81, %85 : vector<2x8x8xf32>
    %87 = arith.truncf %86 : vector<2x8x8xf32> to vector<2x8x8xbf16>
    "tpu.trace_start"() <{level = 10 : i32, message = "bqk,bkd->bqd"}> : () -> ()
    %cst_28 = arith.constant dense<0.000000e+00> : vector<2x8x32xf32>
    %88 = tpu.matmul %87, %75, %cst_28 {dimension_numbers = #tpu.dot_dimension_numbers<[2], [1], [1], [2], [0, 0, 0, 1, 1, 2], [0], [0]>} : vector<2x8x8xbf16>, vector<2x8x32xbf16>, vector<2x8x32xf32> -> vector<2x8x32xf32>
    "tpu.trace_stop"() : () -> ()
    %89 = vector.extract_strided_slice %52 {offsets = [0, 0, 64], sizes = [2, 8, 32], strides = [1, 1, 1]} : vector<2x8x128xbf16> to vector<2x8x32xbf16>
    %90 = vector.extract_strided_slice %54 {offsets = [0, 0, 64], sizes = [2, 8, 32], strides = [1, 1, 1]} : vector<2x8x128xbf16> to vector<2x8x32xbf16>
    %91 = vector.extract_strided_slice %56 {offsets = [0, 0, 64], sizes = [2, 8, 32], strides = [1, 1, 1]} : vector<2x8x128xbf16> to vector<2x8x32xbf16>
    "tpu.trace_start"() <{level = 10 : i32, message = "bqd,bkd->bqk"}> : () -> ()
    %cst_29 = arith.constant dense<0.000000e+00> : vector<2x8x8xf32>
    %92 = tpu.matmul %89, %90, %cst_29 {dimension_numbers = #tpu.dot_dimension_numbers<[2], [2], [1], [1], [0, 0, 0, 1, 1, 1], [0], [0]>} : vector<2x8x32xbf16>, vector<2x8x32xbf16>, vector<2x8x8xf32> -> vector<2x8x8xf32>
    "tpu.trace_stop"() : () -> ()
    %cst_30 = arith.constant dense<0xFF800000> : vector<2x8xf32>
    %93 = vector.multi_reduction <maximumf>, %92, %cst_30 [2] : vector<2x8x8xf32> to vector<2x8xf32>
    %94 = vector.shape_cast %93 : vector<2x8xf32> to vector<2x8x1xf32>
    %95 = vector.broadcast %94 : vector<2x8x1xf32> to vector<2x8x8xf32>
    %96 = arith.subf %92, %95 : vector<2x8x8xf32>
    %97 = math.exp %96 : vector<2x8x8xf32>
    %cst_31 = arith.constant dense<0.000000e+00> : vector<2x8xf32>
    %98 = vector.multi_reduction <add>, %97, %cst_31 [2] : vector<2x8x8xf32> to vector<2x8xf32>
    %99 = vector.shape_cast %98 : vector<2x8xf32> to vector<2x8x1xf32>
    %100 = tpu.reciprocal %99 {approx = true} : vector<2x8x1xf32> -> vector<2x8x1xf32>
    %101 = vector.broadcast %100 : vector<2x8x1xf32> to vector<2x8x8xf32>
    %102 = arith.mulf %97, %101 : vector<2x8x8xf32>
    %103 = arith.truncf %102 : vector<2x8x8xf32> to vector<2x8x8xbf16>
    "tpu.trace_start"() <{level = 10 : i32, message = "bqk,bkd->bqd"}> : () -> ()
    %cst_32 = arith.constant dense<0.000000e+00> : vector<2x8x32xf32>
    %104 = tpu.matmul %103, %91, %cst_32 {dimension_numbers = #tpu.dot_dimension_numbers<[2], [1], [1], [2], [0, 0, 0, 1, 1, 2], [0], [0]>} : vector<2x8x8xbf16>, vector<2x8x32xbf16>, vector<2x8x32xf32> -> vector<2x8x32xf32>
    "tpu.trace_stop"() : () -> ()
    %105 = vector.extract_strided_slice %52 {offsets = [0, 0, 96], sizes = [2, 8, 32], strides = [1, 1, 1]} : vector<2x8x128xbf16> to vector<2x8x32xbf16>
    %106 = vector.extract_strided_slice %54 {offsets = [0, 0, 96], sizes = [2, 8, 32], strides = [1, 1, 1]} : vector<2x8x128xbf16> to vector<2x8x32xbf16>
    %107 = vector.extract_strided_slice %56 {offsets = [0, 0, 96], sizes = [2, 8, 32], strides = [1, 1, 1]} : vector<2x8x128xbf16> to vector<2x8x32xbf16>
    "tpu.trace_start"() <{level = 10 : i32, message = "bqd,bkd->bqk"}> : () -> ()
    %cst_33 = arith.constant dense<0.000000e+00> : vector<2x8x8xf32>
    %108 = tpu.matmul %105, %106, %cst_33 {dimension_numbers = #tpu.dot_dimension_numbers<[2], [2], [1], [1], [0, 0, 0, 1, 1, 1], [0], [0]>} : vector<2x8x32xbf16>, vector<2x8x32xbf16>, vector<2x8x8xf32> -> vector<2x8x8xf32>
    "tpu.trace_stop"() : () -> ()
    %cst_34 = arith.constant dense<0xFF800000> : vector<2x8xf32>
    %109 = vector.multi_reduction <maximumf>, %108, %cst_34 [2] : vector<2x8x8xf32> to vector<2x8xf32>
    %110 = vector.shape_cast %109 : vector<2x8xf32> to vector<2x8x1xf32>
    %111 = vector.broadcast %110 : vector<2x8x1xf32> to vector<2x8x8xf32>
    %112 = arith.subf %108, %111 : vector<2x8x8xf32>
    %113 = math.exp %112 : vector<2x8x8xf32>
    %cst_35 = arith.constant dense<0.000000e+00> : vector<2x8xf32>
    %114 = vector.multi_reduction <add>, %113, %cst_35 [2] : vector<2x8x8xf32> to vector<2x8xf32>
    %115 = vector.shape_cast %114 : vector<2x8xf32> to vector<2x8x1xf32>
    %116 = tpu.reciprocal %115 {approx = true} : vector<2x8x1xf32> -> vector<2x8x1xf32>
    %117 = vector.broadcast %116 : vector<2x8x1xf32> to vector<2x8x8xf32>
    %118 = arith.mulf %113, %117 : vector<2x8x8xf32>
    %119 = arith.truncf %118 : vector<2x8x8xf32> to vector<2x8x8xbf16>
    "tpu.trace_start"() <{level = 10 : i32, message = "bqk,bkd->bqd"}> : () -> ()
    %cst_36 = arith.constant dense<0.000000e+00> : vector<2x8x32xf32>
    %120 = tpu.matmul %119, %107, %cst_36 {dimension_numbers = #tpu.dot_dimension_numbers<[2], [1], [1], [2], [0, 0, 0, 1, 1, 2], [0], [0]>} : vector<2x8x8xbf16>, vector<2x8x32xbf16>, vector<2x8x32xf32> -> vector<2x8x32xf32>
    "tpu.trace_stop"() : () -> ()
    %121 = tpu.concatenate %72, %88, %104, %120 in 2 : vector<2x8x32xf32>, vector<2x8x32xf32>, vector<2x8x32xf32>, vector<2x8x32xf32> -> vector<2x8x128xf32>
    %122 = vector.shape_cast %121 : vector<2x8x128xf32> to vector<16x128xf32>
    %123 = arith.truncf %122 : vector<16x128xf32> to vector<16x128xbf16>
    %c0_37 = arith.constant 0 : index
    %c0_38 = arith.constant 0 : index
    %c0_39 = arith.constant 0 : index
    %124 = vector.load %arg6[%c0_37, %c0_38, %c0_39] : memref<1x128x128xbf16, #tpu.memory_space<vmem>>, vector<1x128x128xbf16>
    %125 = vector.shape_cast %124 : vector<1x128x128xbf16> to vector<128x128xbf16>
    %cst_40 = arith.constant dense<0.000000e+00> : vector<16x128xf32>
    %126 = tpu.matmul %123, %125, %cst_40 {dimension_numbers = #tpu.dot_dimension_numbers<[1], [0], [0], [1], [0, 0, 1, 1], [], []>} : vector<16x128xbf16>, vector<128x128xbf16>, vector<16x128xf32> -> vector<16x128xf32>
    %127 = arith.addf %13, %126 : vector<16x128xf32>
    %128 = vector.broadcast %7 : vector<1x128xf32> to vector<16x128xf32>
    %129 = arith.addf %127, %128 : vector<16x128xf32>
    %cst_41 = arith.constant dense<0.000000e+00> : vector<16xf32>
    %130 = vector.multi_reduction <add>, %129, %cst_41 [1] : vector<16x128xf32> to vector<16xf32>
    %131 = vector.shape_cast %130 : vector<16xf32> to vector<16x1xf32>
    %cst_42 = arith.constant 1.280000e+02 : f32
    %132 = vector.broadcast %cst_42 : f32 to vector<16x1xf32>
    %133 = arith.divf %131, %132 : vector<16x1xf32>
    %134 = vector.broadcast %133 : vector<16x1xf32> to vector<16x128xf32>
    %135 = arith.subf %129, %134 : vector<16x128xf32>
    %136 = arith.mulf %135, %135 : vector<16x128xf32>
    %cst_43 = arith.constant dense<0.000000e+00> : vector<16xf32>
    %137 = vector.multi_reduction <add>, %136, %cst_43 [1] : vector<16x128xf32> to vector<16xf32>
    %138 = vector.shape_cast %137 : vector<16xf32> to vector<16x1xf32>
    %cst_44 = arith.constant 1.280000e+02 : f32
    %139 = vector.broadcast %cst_44 : f32 to vector<16x1xf32>
    %140 = arith.divf %138, %139 : vector<16x1xf32>
    %141 = vector.broadcast %133 : vector<16x1xf32> to vector<16x128xf32>
    %142 = arith.subf %129, %141 : vector<16x128xf32>
    %cst_45 = arith.constant 9.99999974E-6 : f32
    %143 = vector.broadcast %cst_45 : f32 to vector<16x1xf32>
    %144 = arith.addf %140, %143 : vector<16x1xf32>
    %145 = math.rsqrt %144 : vector<16x1xf32>
    %146 = vector.broadcast %145 : vector<16x1xf32> to vector<16x128xf32>
    %147 = arith.mulf %142, %146 : vector<16x128xf32>
    %148 = vector.broadcast %8 : vector<1x128xf32> to vector<16x128xf32>
    %149 = arith.mulf %147, %148 : vector<16x128xf32>
    %150 = vector.broadcast %9 : vector<1x128xf32> to vector<16x128xf32>
    %151 = arith.addf %149, %150 : vector<16x128xf32>
    %152 = arith.truncf %151 : vector<16x128xf32> to vector<16x128xbf16>
    %c0_46 = arith.constant 0 : index
    %c0_47 = arith.constant 0 : index
    %c0_48 = arith.constant 0 : index
    %153 = vector.load %arg7[%c0_46, %c0_47, %c0_48] : memref<1x128x128xbf16, #tpu.memory_space<vmem>>, vector<1x128x128xbf16>
    %154 = vector.shape_cast %153 : vector<1x128x128xbf16> to vector<128x128xbf16>
    %cst_49 = arith.constant dense<0.000000e+00> : vector<16x128xf32>
    %155 = tpu.matmul %152, %154, %cst_49 {dimension_numbers = #tpu.dot_dimension_numbers<[1], [0], [0], [1], [0, 0, 1, 1], [], []>} : vector<16x128xbf16>, vector<128x128xbf16>, vector<16x128xf32> -> vector<16x128xf32>
    %156 = vector.broadcast %10 : vector<1x128xf32> to vector<16x128xf32>
    %157 = arith.addf %155, %156 : vector<16x128xf32>
    %cst_50 = arith.constant 5.000000e-01 : f32
    %158 = vector.broadcast %cst_50 : f32 to vector<16x128xf32>
    %159 = arith.mulf %158, %157 : vector<16x128xf32>
    %cst_51 = arith.constant 0.707106769 : f32
    %160 = vector.broadcast %cst_51 : f32 to vector<16x128xf32>
    %161 = arith.mulf %157, %160 : vector<16x128xf32>
    %162 = math.erf %161 : vector<16x128xf32>
    %cst_52 = arith.constant 1.000000e+00 : f32
    %163 = vector.broadcast %cst_52 : f32 to vector<16x128xf32>
    %164 = arith.addf %163, %162 : vector<16x128xf32>
    %165 = arith.mulf %159, %164 : vector<16x128xf32>
    %166 = arith.truncf %165 : vector<16x128xf32> to vector<16x128xbf16>
    %c0_53 = arith.constant 0 : index
    %c0_54 = arith.constant 0 : index
    %c0_55 = arith.constant 0 : index
    %167 = vector.load %arg8[%c0_53, %c0_54, %c0_55] : memref<1x128x128xbf16, #tpu.memory_space<vmem>>, vector<1x128x128xbf16>
    %168 = vector.shape_cast %167 : vector<1x128x128xbf16> to vector<128x128xbf16>
    %cst_56 = arith.constant dense<0.000000e+00> : vector<16x128xf32>
    %169 = tpu.matmul %166, %168, %cst_56 {dimension_numbers = #tpu.dot_dimension_numbers<[1], [0], [0], [1], [0, 0, 1, 1], [], []>} : vector<16x128xbf16>, vector<128x128xbf16>, vector<16x128xf32> -> vector<16x128xf32>
    %170 = arith.addf %129, %169 : vector<16x128xf32>
    %171 = vector.broadcast %11 : vector<1x128xf32> to vector<16x128xf32>
    %172 = arith.addf %170, %171 : vector<16x128xf32>
    %c1_i32 = arith.constant 1 : i32
    %173 = arith.cmpi slt, %arg1, %c1_i32 : i32
    %174 = arith.extui %173 : i1 to i32
    %c0_i32_57 = arith.constant 0 : i32
    %175 = arith.cmpi ne, %174, %c0_i32_57 : i32
    scf.if %175 {
      %179 = vector.shape_cast %172 : vector<16x128xf32> to vector<2x8x128xf32>
      %c0_60 = arith.constant 0 : index
      %c0_61 = arith.constant 0 : index
      %c0_62 = arith.constant 0 : index
      %180 = vector.load %arg11[%c0_60, %c0_61, %c0_62] : memref<2x8x128xf32, #tpu.memory_space<vmem>>, vector<2x8x128xf32>
      tpu.vector_store %arg11[%c0_60, %c0_61, %c0_62], %179 {strides = array<i32>} : memref<2x8x128xf32, #tpu.memory_space<vmem>>, vector<2x8x128xf32>,
    } else {
    }
    %c1_i32_58 = arith.constant 1 : i32
    %176 = arith.cmpi eq, %arg1, %c1_i32_58 : i32
    %177 = arith.extui %176 : i1 to i32
    %c0_i32_59 = arith.constant 0 : i32
    %178 = arith.cmpi ne, %177, %c0_i32_59 : i32
    scf.if %178 {
      %c0_60 = arith.constant 0 : index
      %c0_61 = arith.constant 0 : index
      %179 = vector.load %arg10[%c0_60, %c0_61] : memref<2x128xf32, #tpu.memory_space<vmem>>, vector<2x128xf32>
      %180 = vector.extract_strided_slice %179 {offsets = [0, 0], sizes = [1, 128], strides = [1, 1]} : vector<2x128xf32> to vector<1x128xf32>
      %181 = vector.extract_strided_slice %179 {offsets = [1, 0], sizes = [1, 128], strides = [1, 1]} : vector<2x128xf32> to vector<1x128xf32>
      %cst_62 = arith.constant dense<0.000000e+00> : vector<16xf32>
      %182 = vector.multi_reduction <add>, %172, %cst_62 [1] : vector<16x128xf32> to vector<16xf32>
      %183 = vector.shape_cast %182 : vector<16xf32> to vector<16x1xf32>
      %cst_63 = arith.constant 1.280000e+02 : f32
      %184 = vector.broadcast %cst_63 : f32 to vector<16x1xf32>
      %185 = arith.divf %183, %184 : vector<16x1xf32>
      %186 = vector.broadcast %185 : vector<16x1xf32> to vector<16x128xf32>
      %187 = arith.subf %172, %186 : vector<16x128xf32>
      %188 = arith.mulf %187, %187 : vector<16x128xf32>
      %cst_64 = arith.constant dense<0.000000e+00> : vector<16xf32>
      %189 = vector.multi_reduction <add>, %188, %cst_64 [1] : vector<16x128xf32> to vector<16xf32>
      %190 = vector.shape_cast %189 : vector<16xf32> to vector<16x1xf32>
      %cst_65 = arith.constant 1.280000e+02 : f32
      %191 = vector.broadcast %cst_65 : f32 to vector<16x1xf32>
      %192 = arith.divf %190, %191 : vector<16x1xf32>
      %193 = vector.broadcast %185 : vector<16x1xf32> to vector<16x128xf32>
      %194 = arith.subf %172, %193 : vector<16x128xf32>
      %cst_66 = arith.constant 9.99999974E-6 : f32
      %195 = vector.broadcast %cst_66 : f32 to vector<16x1xf32>
      %196 = arith.addf %192, %195 : vector<16x1xf32>
      %197 = math.rsqrt %196 : vector<16x1xf32>
      %198 = vector.broadcast %197 : vector<16x1xf32> to vector<16x128xf32>
      %199 = arith.mulf %194, %198 : vector<16x128xf32>
      %200 = vector.broadcast %180 : vector<1x128xf32> to vector<16x128xf32>
      %201 = arith.mulf %199, %200 : vector<16x128xf32>
      %202 = vector.broadcast %181 : vector<1x128xf32> to vector<16x128xf32>
      %203 = arith.addf %201, %202 : vector<16x128xf32>
      %204 = vector.shape_cast %203 : vector<16x128xf32> to vector<2x8x128xf32>
      %c0_67 = arith.constant 0 : index
      %c0_68 = arith.constant 0 : index
      %c0_69 = arith.constant 0 : index
      %205 = vector.load %arg11[%c0_67, %c0_68, %c0_69] : memref<2x8x128xf32, #tpu.memory_space<vmem>>, vector<2x8x128xf32>
      tpu.vector_store %arg11[%c0_67, %c0_68, %c0_69], %204 {strides = array<i32>} : memref<2x8x128xf32, #tpu.memory_space<vmem>>, vector<2x8x128xf32>,
    } else {
    }
    return
  }
  func.func @transform_0(%arg0: i32, %arg1: i32) -> (i32, i32, i32) {
    %c0_i32 = arith.constant 0 : i32
    %c0_i32_0 = arith.constant 0 : i32
    %c0_i32_1 = arith.constant 0 : i32
    return %arg0, %c0_i32, %c0_i32_0 : i32, i32, i32
  }
  func.func @transform_1(%arg0: i32, %arg1: i32) -> (i32, i32) {
    %c0_i32 = arith.constant 0 : i32
    %c0_i32_0 = arith.constant 0 : i32
    return %arg0, %c0_i32 : i32, i32
  }
  func.func @transform_2(%arg0: i32, %arg1: i32) -> (i32, i32, i32) {
    %c0_i32 = arith.constant 0 : i32
    %c0_i32_0 = arith.constant 0 : i32
    %c0_i32_1 = arith.constant 0 : i32
    return %arg1, %c0_i32, %c0_i32_0 : i32, i32, i32
  }
  func.func @transform_3(%arg0: i32, %arg1: i32) -> (i32, i32, i32) {
    %c0_i32 = arith.constant 0 : i32
    %c0_i32_0 = arith.constant 0 : i32
    %c0_i32_1 = arith.constant 0 : i32
    return %arg1, %c0_i32, %c0_i32_0 : i32, i32, i32
  }
  func.func @transform_4(%arg0: i32, %arg1: i32) -> (i32, i32, i32) {
    %c0_i32 = arith.constant 0 : i32
    %c0_i32_0 = arith.constant 0 : i32
    %c0_i32_1 = arith.constant 0 : i32
    return %arg1, %c0_i32, %c0_i32_0 : i32, i32, i32
  }
  func.func @transform_5(%arg0: i32, %arg1: i32) -> (i32, i32, i32) {
    %c0_i32 = arith.constant 0 : i32
    %c0_i32_0 = arith.constant 0 : i32
    %c0_i32_1 = arith.constant 0 : i32
    return %arg1, %c0_i32, %c0_i32_0 : i32, i32, i32
  }
  func.func @transform_6(%arg0: i32, %arg1: i32) -> (i32, i32, i32) {
    %c0_i32 = arith.constant 0 : i32
    %c0_i32_0 = arith.constant 0 : i32
    %c0_i32_1 = arith.constant 0 : i32
    return %arg1, %c0_i32, %c0_i32_0 : i32, i32, i32
  }
  func.func @transform_7(%arg0: i32, %arg1: i32) -> (i32, i32, i32) {
    %c0_i32 = arith.constant 0 : i32
    %c0_i32_0 = arith.constant 0 : i32
    %c0_i32_1 = arith.constant 0 : i32
    return %arg1, %c0_i32, %c0_i32_0 : i32, i32, i32
  }
  func.func @transform_8(%arg0: i32, %arg1: i32) -> (i32, i32) {
    %c0_i32 = arith.constant 0 : i32
    %c0_i32_0 = arith.constant 0 : i32
    %c0_i32_1 = arith.constant 0 : i32
    return %c0_i32, %c0_i32_0 : i32, i32
  }
  func.func @transform_9(%arg0: i32, %arg1: i32) -> (i32, i32, i32) {
    %c0_i32 = arith.constant 0 : i32
    %c0_i32_0 = arith.constant 0 : i32
    %c0_i32_1 = arith.constant 0 : i32
    return %arg0, %c0_i32, %c0_i32_0 : i32, i32, i32
  }
}

</mosaic_0001>

<llo_original>
// kernel: tpu_custom_call.1
$region0: #{tpu_custom_call.1}
  #allocation0 [shape = 'u32[]', space=smem, size = 0x4, offset = 0x4, fixed_abs, tag = 'smem constant byte address 0x4 - core index']
  #allocation1 [shape = 'u32[144,128]{1,0:T(1,128)}', space=vmem, size = 0x12000, scoped, tag = 'internal scratch']
  %s0 = inlined_call_operand.hbm [shape: f32[2,8,128], index: 0, kind: input, shape index: {}, may-alias: {0,9}]
  %s1 = inlined_call_operand.vmem [shape: f32[2,32], index: 1, kind: input, shape index: {}]
  %s2 = inlined_call_operand.hbm [shape: bf16[2,128,384], index: 2, kind: input, shape index: {}]
  %s3 = inlined_call_operand.vmem [shape: bf16[2,32,128], index: 3, kind: input, shape index: {}]
  %s4 = inlined_call_operand.hbm [shape: bf16[2,128,128], index: 4, kind: input, shape index: {}]
  %s5 = inlined_call_operand.hbm [shape: bf16[2,128,128], index: 5, kind: input, shape index: {}]
  %s6 = inlined_call_operand.hbm [shape: bf16[2,128,128], index: 6, kind: input, shape index: {}]
  %s7 = inlined_call_operand.hbm [shape: f32[2,8,128], index: 7, kind: input, shape index: {}]
  %s8 = inlined_call_operand.vmem [shape: f32[2,128], index: 8, kind: input, shape index: {}]
  %s9 = inlined_call_operand.hbm [shape: f32[2,8,128], index: 9, kind: output, shape index: {}, may-alias: {0,9}]
  %s10 = sld [smem:[#allocation0]]
  $region105: #{tpu_custom_call.1} parent=0
    _
  %s12 = ssub.s32 1, %s10
  %s13 = scalar_select 0, %s12, %s10
  $region1: #{tpu_custom_call.1} parent=0
    #allocation2 [shape = 'u8[8192]{0}', space=vmem, size = 0x2000, scoped, tag = 'input window, operand 0, single buffered']
    #allocation3 [shape = 's32[2]{0}', space=sflag, size = 0x8, scoped, tag = 'scoped memory for tpu_custom_call.1']
    #allocation4 [shape = 's32[2]{0}', space=sflag, size = 0x8, scoped, tag = 'scoped memory for tpu_custom_call.1']
    #allocation5 [shape = 'u8[196608]{0}', space=vmem, size = 0x30000, scoped, tag = 'input window, operand 2']
    #allocation6 [shape = 's32[2]{0}', space=sflag, size = 0x8, scoped, tag = 'scoped memory for tpu_custom_call.1']
    #allocation7 [shape = 'u8[65536]{0}', space=vmem, size = 0x10000, scoped, tag = 'input window, operand 4']
    #allocation8 [shape = 'u8[65536]{0}', space=vmem, size = 0x10000, scoped, tag = 'input window, operand 5']
    #allocation9 [shape = 's32[2]{0}', space=sflag, size = 0x8, scoped, tag = 'scoped memory for tpu_custom_call.1']
    #allocation10 [shape = 'u8[65536]{0}', space=vmem, size = 0x10000, scoped, tag = 'input window, operand 6']
    #allocation11 [shape = 'u8[8192]{0}', space=vmem, size = 0x2000, scoped, tag = 'input window, operand 7']
    #allocation12 [shape = 's32[2]{0}', space=sflag, size = 0x8, scoped, tag = 'scoped memory for tpu_custom_call.1']
    #allocation13 [shape = 'u8[8192]{0}', space=vmem, size = 0x2000, scoped, tag = 'output window, operand 0, single buffered']
    %14 = vsyncpa [#allocation3], 0
    %15 = vsyncpa [#allocation6], 0
    %s16 = scalar_lea.sflag [#allocation6], 1
    %17 = vsyncpa %s16, 0
    %18 = vsyncpa [#allocation9], 0
    %s19 = scalar_lea.sflag [#allocation9], 1
    %20 = vsyncpa %s19, 0
    %21 = vsyncpa [#allocation12], 0
    %s22 = scalar_lea.sflag [#allocation12], 1
    %23 = vsyncpa %s22, 0
    %24 = vsyncpa [#allocation4], 0
    loop: start=0, step=1, limit=4
    $region2: #{tpu_custom_call.1} parent=1 // loop_pre_header
      _
    $region3: #{tpu_custom_call.1} parent=1 // loop_header
      %s26 = sphi 0, %s30
      %p27 = scmp.ge.s32.totalorder %s26, 4
      %s33 = sphi 0, %s45
      %s34 = sphi 0, %s41
      %s35 = sphi 0, %s33
      %s36 = sphi 0, %s34
      %s37 = sphi 0, %s35
      %s38 = sphi 0, %s36
      %s48 = sphi 0, %s50
      %s51 = sphi 0, %s48
      %s52 = sphi 0, %s51
      %s68 = sphi 0, %s52
      %s74 = sphi 0, %s76
      %s77 = sphi 0, %s74
      %s78 = sphi 0, %s77
      %s94 = sphi 0, %s78
      %s100 = sphi 0, %s102
      %s103 = sphi 0, %s100
      %s104 = sphi 0, %s103
      %s120 = sphi 0, %s104
      %s126 = sphi 0, %s128
      %s129 = sphi 0, %s126
      %s130 = sphi 0, %s129
      %s146 = sphi 0, %s130
      %s152 = sphi 0, %s154
      %s155 = sphi 0, %s152
      %s156 = sphi 0, %s155
      %s172 = sphi 0, %s156
      %s178 = sphi 0, %s180
      %s181 = sphi 0, %s178
      %s182 = sphi 0, %s181
      %s198 = sphi 0, %s182
      %s204 = sphi 0, %s206
      %s207 = sphi 0, %s204
      %s208 = sphi 0, %s207
      %s224 = sphi 0, %s208
      %s230 = sphi 0, %s232
      %s233 = sphi 0, %s230
      %s234 = sphi 0, %s233
      %s250 = sphi 0, %s234
      %s254 = sphi 0, %s254
      %s256 = sphi 0, %s254
      %s257 = sphi 0, %s256
      %s271 = sphi 0, %s257
      %s277 = sphi 0, %s279
      %s280 = sphi 0, %s277
      %s281 = sphi 0, %s280
      %s297 = sphi 0, %s281
    $region4: #{tpu_custom_call.1} parent=1 // loop_header_branch
      %29 = sbr.rel (%p27) target = $region8
    $region5: #{tpu_custom_call.1} parent=1 // loop_body
      %s31 = ssub.s32 %s26, 1
      %s32 = ssub.s32 %s26, 2
      %s39 = sadd.s32 1, %s34
      %p40 = scmp.ge.s32.totalorder %s39, 2
      %s41 = scalar_select %p40, 0, %s39
      %s42 = sadd.s32 1, %s33
      %s43 = scalar_select %p40, %s42, %s33
      %p44 = scmp.ge.s32.totalorder %s43, 1
      %s45 = scalar_select %p44, 0, %s43
      %s46 = ssub.s32 %s33, %s45
      %p47 = scmp.eq.s32.totalorder %s46, 0
      %s49 = sadd.s32 %s48, 1
      %s50 = scalar_select %p47, %s48, %s49
      %p53 = pneg %p47
      %p54 = scmp.eq.s32.totalorder %s26, 1
      %p55 = por %p53, %p54
      %p56 = scmp.ne.s32.totalorder %s48, %s51
      %p57 = scmp.eq.s32.totalorder %s26, 0
      %p58 = por %p56, %p57
      %p59 = scmp.ne.s32.totalorder %s48, %s51
      %p60 = scmp.eq.s32.totalorder %s31, 1
      %p61 = por %p59, %p60
      %p62 = scmp.ne.s32.totalorder %s51, %s52
      %p63 = scmp.eq.s32.totalorder %s31, 0
      %p64 = por %p62, %p63
      %p65 = scmp.ne.s32.totalorder %s51, %s52
      %p66 = scmp.eq.s32.totalorder %s32, 1
      %p67 = por %p65, %p66
      %p69 = scmp.ne.s32.totalorder %s52, %s68
      %p70 = scmp.eq.s32.totalorder %s32, 0
      %p71 = por %p69, %p70
      %s72 = ssub.s32 %s33, %s45
      %p73 = scmp.eq.s32.totalorder %s72, 0
      %s75 = sadd.s32 %s74, 1
      %s76 = scalar_select %p73, %s74, %s75
      %p79 = pneg %p73
      %p80 = scmp.eq.s32.totalorder %s26, 1
      %p81 = por %p79, %p80
      %p82 = scmp.ne.s32.totalorder %s74, %s77
      %p83 = scmp.eq.s32.totalorder %s26, 0
      %p84 = por %p82, %p83
      %p85 = scmp.ne.s32.totalorder %s74, %s77
      %p86 = scmp.eq.s32.totalorder %s31, 1
      %p87 = por %p85, %p86
      %p88 = scmp.ne.s32.totalorder %s77, %s78
      %p89 = scmp.eq.s32.totalorder %s31, 0
      %p90 = por %p88, %p89
      %p91 = scmp.ne.s32.totalorder %s77, %s78
      %p92 = scmp.eq.s32.totalorder %s32, 1
      %p93 = por %p91, %p92
      %p95 = scmp.ne.s32.totalorder %s78, %s94
      %p96 = scmp.eq.s32.totalorder %s32, 0
      %p97 = por %p95, %p96
      %s98 = ssub.s32 %s34, %s41
      %p99 = scmp.eq.s32.totalorder %s98, 0
      %s101 = sadd.s32 %s100, 1
      %s102 = scalar_select %p99, %s100, %s101
      %p105 = pneg %p99
      %p106 = scmp.eq.s32.totalorder %s26, 1
      %p107 = por %p105, %p106
      %p108 = scmp.ne.s32.totalorder %s100, %s103
      %p109 = scmp.eq.s32.totalorder %s26, 0
      %p110 = por %p108, %p109
      %p111 = scmp.ne.s32.totalorder %s100, %s103
      %p112 = scmp.eq.s32.totalorder %s31, 1
      %p113 = por %p111, %p112
      %p114 = scmp.ne.s32.totalorder %s103, %s104
      %p115 = scmp.eq.s32.totalorder %s31, 0
      %p116 = por %p114, %p115
      %p117 = scmp.ne.s32.totalorder %s103, %s104
      %p118 = scmp.eq.s32.totalorder %s32, 1
      %p119 = por %p117, %p118
      %p121 = scmp.ne.s32.totalorder %s104, %s120
      %p122 = scmp.eq.s32.totalorder %s32, 0
      %p123 = por %p121, %p122
      %s124 = ssub.s32 %s34, %s41
      %p125 = scmp.eq.s32.totalorder %s124, 0
      %s127 = sadd.s32 %s126, 1
      %s128 = scalar_select %p125, %s126, %s127
      %p131 = pneg %p125
      %p132 = scmp.eq.s32.totalorder %s26, 1
      %p133 = por %p131, %p132
      %p134 = scmp.ne.s32.totalorder %s126, %s129
      %p135 = scmp.eq.s32.totalorder %s26, 0
      %p136 = por %p134, %p135
      %p137 = scmp.ne.s32.totalorder %s126, %s129
      %p138 = scmp.eq.s32.totalorder %s31, 1
      %p139 = por %p137, %p138
      %p140 = scmp.ne.s32.totalorder %s129, %s130
      %p141 = scmp.eq.s32.totalorder %s31, 0
      %p142 = por %p140, %p141
      %p143 = scmp.ne.s32.totalorder %s129, %s130
      %p144 = scmp.eq.s32.totalorder %s32, 1
      %p145 = por %p143, %p144
      %p147 = scmp.ne.s32.totalorder %s130, %s146
      %p148 = scmp.eq.s32.totalorder %s32, 0
      %p149 = por %p147, %p148
      %s150 = ssub.s32 %s34, %s41
      %p151 = scmp.eq.s32.totalorder %s150, 0
      %s153 = sadd.s32 %s152, 1
      %s154 = scalar_select %p151, %s152, %s153
      %p157 = pneg %p151
      %p158 = scmp.eq.s32.totalorder %s26, 1
      %p159 = por %p157, %p158
      %p160 = scmp.ne.s32.totalorder %s152, %s155
      %p161 = scmp.eq.s32.totalorder %s26, 0
      %p162 = por %p160, %p161
      %p163 = scmp.ne.s32.totalorder %s152, %s155
      %p164 = scmp.eq.s32.totalorder %s31, 1
      %p165 = por %p163, %p164
      %p166 = scmp.ne.s32.totalorder %s155, %s156
      %p167 = scmp.eq.s32.totalorder %s31, 0
      %p168 = por %p166, %p167
      %p169 = scmp.ne.s32.totalorder %s155, %s156
      %p170 = scmp.eq.s32.totalorder %s32, 1
      %p171 = por %p169, %p170
      %p173 = scmp.ne.s32.totalorder %s156, %s172
      %p174 = scmp.eq.s32.totalorder %s32, 0
      %p175 = por %p173, %p174
      %s176 = ssub.s32 %s34, %s41
      %p177 = scmp.eq.s32.totalorder %s176, 0
      %s179 = sadd.s32 %s178, 1
      %s180 = scalar_select %p177, %s178, %s179
      %p183 = pneg %p177
      %p184 = scmp.eq.s32.totalorder %s26, 1
      %p185 = por %p183, %p184
      %p186 = scmp.ne.s32.totalorder %s178, %s181
      %p187 = scmp.eq.s32.totalorder %s26, 0
      %p188 = por %p186, %p187
      %p189 = scmp.ne.s32.totalorder %s178, %s181
      %p190 = scmp.eq.s32.totalorder %s31, 1
      %p191 = por %p189, %p190
      %p192 = scmp.ne.s32.totalorder %s181, %s182
      %p193 = scmp.eq.s32.totalorder %s31, 0
      %p194 = por %p192, %p193
      %p195 = scmp.ne.s32.totalorder %s181, %s182
      %p196 = scmp.eq.s32.totalorder %s32, 1
      %p197 = por %p195, %p196
      %p199 = scmp.ne.s32.totalorder %s182, %s198
      %p200 = scmp.eq.s32.totalorder %s32, 0
      %p201 = por %p199, %p200
      %s202 = ssub.s32 %s34, %s41
      %p203 = scmp.eq.s32.totalorder %s202, 0
      %s205 = sadd.s32 %s204, 1
      %s206 = scalar_select %p203, %s204, %s205
      %p209 = pneg %p203
      %p210 = scmp.eq.s32.totalorder %s26, 1
      %p211 = por %p209, %p210
      %p212 = scmp.ne.s32.totalorder %s204, %s207
      %p213 = scmp.eq.s32.totalorder %s26, 0
      %p214 = por %p212, %p213
      %p215 = scmp.ne.s32.totalorder %s204, %s207
      %p216 = scmp.eq.s32.totalorder %s31, 1
      %p217 = por %p215, %p216
      %p218 = scmp.ne.s32.totalorder %s207, %s208
      %p219 = scmp.eq.s32.totalorder %s31, 0
      %p220 = por %p218, %p219
      %p221 = scmp.ne.s32.totalorder %s207, %s208
      %p222 = scmp.eq.s32.totalorder %s32, 1
      %p223 = por %p221, %p222
      %p225 = scmp.ne.s32.totalorder %s208, %s224
      %p226 = scmp.eq.s32.totalorder %s32, 0
      %p227 = por %p225, %p226
      %s228 = ssub.s32 %s34, %s41
      %p229 = scmp.eq.s32.totalorder %s228, 0
      %s231 = sadd.s32 %s230, 1
      %s232 = scalar_select %p229, %s230, %s231
      %p235 = pneg %p229
      %p236 = scmp.eq.s32.totalorder %s26, 1
      %p237 = por %p235, %p236
      %p238 = scmp.ne.s32.totalorder %s230, %s233
      %p239 = scmp.eq.s32.totalorder %s26, 0
      %p240 = por %p238, %p239
      %p241 = scmp.ne.s32.totalorder %s230, %s233
      %p242 = scmp.eq.s32.totalorder %s31, 1
      %p243 = por %p241, %p242
      %p244 = scmp.ne.s32.totalorder %s233, %s234
      %p245 = scmp.eq.s32.totalorder %s31, 0
      %p246 = por %p244, %p245
      %p247 = scmp.ne.s32.totalorder %s233, %s234
      %p248 = scmp.eq.s32.totalorder %s32, 1
      %p249 = por %p247, %p248
      %p251 = scmp.ne.s32.totalorder %s234, %s250
      %p252 = scmp.eq.s32.totalorder %s32, 0
      %p253 = por %p251, %p252
      %s255 = sadd.s32 %s254, 1
      %p258 = scmp.eq.s32.totalorder %s26, 1
      %p259 = scmp.ne.s32.totalorder %s254, %s256
      %p260 = scmp.eq.s32.totalorder %s26, 0
      %p261 = por %p259, %p260
      %p262 = scmp.ne.s32.totalorder %s254, %s256
      %p263 = scmp.eq.s32.totalorder %s31, 1
      %p264 = por %p262, %p263
      %p265 = scmp.ne.s32.totalorder %s256, %s257
      %p266 = scmp.eq.s32.totalorder %s31, 0
      %p267 = por %p265, %p266
      %p268 = scmp.ne.s32.totalorder %s256, %s257
      %p269 = scmp.eq.s32.totalorder %s32, 1
      %p270 = por %p268, %p269
      %p272 = scmp.ne.s32.totalorder %s257, %s271
      %p273 = scmp.eq.s32.totalorder %s32, 0
      %p274 = por %p272, %p273
      %s275 = ssub.s32 %s33, %s45
      %p276 = scmp.eq.s32.totalorder %s275, 0
      %s278 = sadd.s32 %s277, 1
      %s279 = scalar_select %p276, %s277, %s278
      %p282 = pneg %p276
      %p283 = scmp.eq.s32.totalorder %s26, 1
      %p284 = por %p282, %p283
      %p285 = scmp.ne.s32.totalorder %s277, %s280
      %p286 = scmp.eq.s32.totalorder %s26, 0
      %p287 = por %p285, %p286
      %p288 = scmp.ne.s32.totalorder %s277, %s280
      %p289 = scmp.eq.s32.totalorder %s31, 1
      %p290 = por %p288, %p289
      %p291 = scmp.ne.s32.totalorder %s280, %s281
      %p292 = scmp.eq.s32.totalorder %s31, 0
      %p293 = por %p291, %p292
      %p294 = scmp.ne.s32.totalorder %s280, %s281
      %p295 = scmp.eq.s32.totalorder %s32, 1
      %p296 = por %p294, %p295
      %p298 = scmp.ne.s32.totalorder %s281, %s297
      %p299 = scmp.eq.s32.totalorder %s32, 0
      %p300 = por %p298, %p299
      %p301 = scmp.le.s32.totalorder 1, %s26
      %p302 = scmp.lt.s32.totalorder %s26, 3
      %p303 = pnand %p301, %p302
      %p304 = pneg %p303
      // Predicated region
      $region9: #{tpu_custom_call.1} parent=5 // pred_check
        _
      $region10: #{tpu_custom_call.1} parent=5 // pred_check_branch
        %306 = sbr.rel (%p303) target = $region12
      $region11: #{tpu_custom_call.1} parent=5 // pred_region
        %s307 = ssub.s32 %s26, 1
        // Predicated region
        $region13: #{tpu_custom_call.1} parent=11 // pred_check
          %p308 = pneg %p64
        $region14: #{tpu_custom_call.1} parent=11 // pred_check_branch
          %310 = sbr.rel (%p308) target = $region16
        $region15: #{tpu_custom_call.1} parent=11 // pred_region
          %s311 = smul.u32 2, %s35
          %s313 = ssub.s32 256, 256
          %314 = vsyncadd [#allocation3], %s313
          %s315 = smul.addr %s311, 128
          %s316 = scalar_lea.hbm %s0, %s315
          %s317 = sshll.u32 [#allocation2], 4
          %s318 = int_to_ptr.vmem [resolvable:$true] %s317
          %323 = dma.hbm_to_vmem [thread:$0]  %s316, 256, %s318, [#allocation3], 128, 128, 8
        $region16: #{tpu_custom_call.1} parent=11 // pred_fallthru
          _
        // Predicated region
        $region17: #{tpu_custom_call.1} parent=11 // pred_check
          %p324 = pneg %p90
        $region18: #{tpu_custom_call.1} parent=11 // pred_check_branch
          %326 = sbr.rel (%p324) target = $region20
        $region19: #{tpu_custom_call.1} parent=11 // pred_region
          %p327 = scmp.lt.s32.totalorder %s35, 0
          %s328 = scalar_select %p327, %s35, 0
          %s329 = smul.addr %s328, 2
          %s330 = scalar_lea.vmem %s1, %s329
        $region20: #{tpu_custom_call.1} parent=11 // pred_fallthru
          _
        // Predicated region
        $region21: #{tpu_custom_call.1} parent=11 // pred_check
          %p331 = pneg %p267
        $region22: #{tpu_custom_call.1} parent=11 // pred_check_branch
          %333 = sbr.rel (%p331) target = $region24
        $region23: #{tpu_custom_call.1} parent=11 // pred_region
          _
        $region24: #{tpu_custom_call.1} parent=11 // pred_fallthru
          _
      $region12: #{tpu_custom_call.1} parent=5 // pred_fallthru
        _
      %p334 = scmp.lt.s32.totalorder %s26, 2
      // Predicated region
      $region25: #{tpu_custom_call.1} parent=5 // pred_check
        %p335 = pneg %p334
      $region26: #{tpu_custom_call.1} parent=5 // pred_check_branch
        %337 = sbr.rel (%p335) target = $region28
      $region27: #{tpu_custom_call.1} parent=5 // pred_region
        // Predicated region
        $region29: #{tpu_custom_call.1} parent=27 // pred_check
          %p338 = pneg %p110
        $region30: #{tpu_custom_call.1} parent=27 // pred_check_branch
          %340 = sbr.rel (%p338) target = $region32
        $region31: #{tpu_custom_call.1} parent=27 // pred_region
          %s341 = sand.u32 %s26, 1
          %s342 = scalar_lea.sflag [#allocation6], %s341
          %s343 = sand.u32 %s100, 1
          %s344 = smul.addr %s343, 192
          %s345 = scalar_lea.vmem [#allocation5], %s344
          %s347 = ssub.s32 3072, 3072
          %348 = vsyncadd %s342, %s347
          %s349 = smul.addr %s34, 48
          %s350 = smul.addr %s349, 64
          %s351 = scalar_lea.hbm %s2, %s350
          %s352 = sshll.u32 %s345, 4
          %s353 = int_to_ptr.vmem [resolvable:$true] %s352
          %358 = dma.hbm_to_vmem [thread:$0]  %s351, 3072, %s353, %s342, 192, 192, 12
        $region32: #{tpu_custom_call.1} parent=27 // pred_fallthru
          _
        // Predicated region
        $region33: #{tpu_custom_call.1} parent=27 // pred_check
          %p359 = pneg %p136
        $region34: #{tpu_custom_call.1} parent=27 // pred_check_branch
          %361 = sbr.rel (%p359) target = $region36
        $region35: #{tpu_custom_call.1} parent=27 // pred_region
          %p362 = scmp.lt.s32.totalorder %s34, 1
          %s363 = scalar_select %p362, %s34, 1
          %s364 = smul.addr %s363, 4
          %s365 = smul.addr %s364, 4
          %s366 = scalar_lea.vmem %s3, %s365
        $region36: #{tpu_custom_call.1} parent=27 // pred_fallthru
          _
        // Predicated region
        $region37: #{tpu_custom_call.1} parent=27 // pred_check
          %p367 = pneg %p162
        $region38: #{tpu_custom_call.1} parent=27 // pred_check_branch
          %369 = sbr.rel (%p367) target = $region40
        $region39: #{tpu_custom_call.1} parent=27 // pred_region
          %s370 = sand.u32 %s26, 1
          %s371 = scalar_lea.sflag [#allocation6], %s370
          %s372 = sand.u32 %s152, 1
          %s373 = smul.addr %s372, 64
          %s374 = scalar_lea.vmem [#allocation7], %s373
          %s376 = ssub.s32 1024, 1024
          %377 = vsyncadd %s371, %s376
          %s378 = smul.addr %s34, 16
          %s379 = smul.addr %s378, 64
          %s380 = scalar_lea.hbm %s4, %s379
          %s381 = sshll.u32 %s374, 4
          %s382 = int_to_ptr.vmem [resolvable:$true] %s381
          %387 = dma.hbm_to_vmem [thread:$0]  %s380, 1024, %s382, %s371, 64, 64, 4
        $region40: #{tpu_custom_call.1} parent=27 // pred_fallthru
          _
        // Predicated region
        $region41: #{tpu_custom_call.1} parent=27 // pred_check
          %p388 = pneg %p188
        $region42: #{tpu_custom_call.1} parent=27 // pred_check_branch
          %390 = sbr.rel (%p388) target = $region44
        $region43: #{tpu_custom_call.1} parent=27 // pred_region
          %s391 = sand.u32 %s26, 1
          %s392 = scalar_lea.sflag [#allocation9], %s391
          %s393 = sand.u32 %s178, 1
          %s394 = smul.addr %s393, 64
          %s395 = scalar_lea.vmem [#allocation8], %s394
          %s397 = ssub.s32 1024, 1024
          %398 = vsyncadd %s392, %s397
          %s399 = smul.addr %s34, 16
          %s400 = smul.addr %s399, 64
          %s401 = scalar_lea.hbm %s5, %s400
          %s402 = sshll.u32 %s395, 4
          %s403 = int_to_ptr.vmem [resolvable:$true] %s402
          %408 = dma.hbm_to_vmem [thread:$0]  %s401, 1024, %s403, %s392, 64, 64, 4
        $region44: #{tpu_custom_call.1} parent=27 // pred_fallthru
          _
        // Predicated region
        $region45: #{tpu_custom_call.1} parent=27 // pred_check
          %p409 = pneg %p214
        $region46: #{tpu_custom_call.1} parent=27 // pred_check_branch
          %411 = sbr.rel (%p409) target = $region48
        $region47: #{tpu_custom_call.1} parent=27 // pred_region
          %s412 = sand.u32 %s26, 1
          %s413 = scalar_lea.sflag [#allocation9], %s412
          %s414 = sand.u32 %s204, 1
          %s415 = smul.addr %s414, 64
          %s416 = scalar_lea.vmem [#allocation10], %s415
          %s418 = ssub.s32 1024, 1024
          %419 = vsyncadd %s413, %s418
          %s420 = smul.addr %s34, 16
          %s421 = smul.addr %s420, 64
          %s422 = scalar_lea.hbm %s6, %s421
          %s423 = sshll.u32 %s416, 4
          %s424 = int_to_ptr.vmem [resolvable:$true] %s423
          %429 = dma.hbm_to_vmem [thread:$0]  %s422, 1024, %s424, %s413, 64, 64, 4
        $region48: #{tpu_custom_call.1} parent=27 // pred_fallthru
          _
        // Predicated region
        $region49: #{tpu_custom_call.1} parent=27 // pred_check
          %p430 = pneg %p240
        $region50: #{tpu_custom_call.1} parent=27 // pred_check_branch
          %432 = sbr.rel (%p430) target = $region52
        $region51: #{tpu_custom_call.1} parent=27 // pred_region
          %s433 = sand.u32 %s230, 1
          %s434 = scalar_lea.sflag [#allocation12], %s433
          %s435 = sand.u32 %s230, 1
          %s436 = smul.addr %s435, 8
          %s437 = scalar_lea.vmem [#allocation11], %s436
          %s439 = ssub.s32 128, 128
          %440 = vsyncadd %s434, %s439
          %s441 = smul.addr %s34, 128
          %s442 = scalar_lea.hbm %s7, %s441
          %s444 = sshll.u32 %s437, 4
          %s445 = int_to_ptr.vmem [resolvable:$true] %s444
          %447 = dma.hbm_to_vmem [thread:$0]  %s442, 128, %s445, %s434
        $region52: #{tpu_custom_call.1} parent=27 // pred_fallthru
          _
      $region28: #{tpu_custom_call.1} parent=5 // pred_fallthru
        _
      %p448 = scmp.le.s32.totalorder 1, %s26
      %p449 = scmp.lt.s32.totalorder %s26, 3
      %p450 = pnand %p448, %p449
      %p451 = pneg %p450
      // Predicated region
      $region53: #{tpu_custom_call.1} parent=5 // pred_check
        _
      $region54: #{tpu_custom_call.1} parent=5 // pred_check_branch
        %453 = sbr.rel (%p450) target = $region56
      $region55: #{tpu_custom_call.1} parent=5 // pred_region
        %s454 = ssub.s32 %s26, 1
        // Predicated region
        $region57: #{tpu_custom_call.1} parent=55 // pred_check
          %p455 = pneg %p64
        $region58: #{tpu_custom_call.1} parent=55 // pred_check_branch
          %457 = sbr.rel (%p455) target = $region60
        $region59: #{tpu_custom_call.1} parent=55 // pred_region
          %458 = dma.done [#allocation3], 256
        $region60: #{tpu_custom_call.1} parent=55 // pred_fallthru
          _
        %s459 = sand.u32 %s31, 1
        %s460 = scalar_lea.sflag [#allocation6], %s459
        %s461 = sand.u32 %s103, 1
        %s462 = smul.addr %s461, 192
        %s463 = scalar_lea.vmem [#allocation5], %s462
        // Predicated region
        $region61: #{tpu_custom_call.1} parent=55 // pred_check
          %p464 = pneg %p116
        $region62: #{tpu_custom_call.1} parent=55 // pred_check_branch
          %466 = sbr.rel (%p464) target = $region64
        $region63: #{tpu_custom_call.1} parent=55 // pred_region
          %467 = dma.done %s460, 3072
        $region64: #{tpu_custom_call.1} parent=55 // pred_fallthru
          _
        %s468 = sand.u32 %s31, 1
        %s469 = scalar_lea.sflag [#allocation6], %s468
        %s470 = sand.u32 %s155, 1
        %s471 = smul.addr %s470, 64
        %s472 = scalar_lea.vmem [#allocation7], %s471
        // Predicated region
        $region65: #{tpu_custom_call.1} parent=55 // pred_check
          %p473 = pneg %p168
        $region66: #{tpu_custom_call.1} parent=55 // pred_check_branch
          %475 = sbr.rel (%p473) target = $region68
        $region67: #{tpu_custom_call.1} parent=55 // pred_region
          %476 = dma.done %s469, 1024
        $region68: #{tpu_custom_call.1} parent=55 // pred_fallthru
          _
        %s477 = sand.u32 %s31, 1
        %s478 = scalar_lea.sflag [#allocation9], %s477
        %s479 = sand.u32 %s181, 1
        %s480 = smul.addr %s479, 64
        %s481 = scalar_lea.vmem [#allocation8], %s480
        // Predicated region
        $region69: #{tpu_custom_call.1} parent=55 // pred_check
          %p482 = pneg %p194
        $region70: #{tpu_custom_call.1} parent=55 // pred_check_branch
          %484 = sbr.rel (%p482) target = $region72
        $region71: #{tpu_custom_call.1} parent=55 // pred_region
          %485 = dma.done %s478, 1024
        $region72: #{tpu_custom_call.1} parent=55 // pred_fallthru
          _
        %s486 = sand.u32 %s31, 1
        %s487 = scalar_lea.sflag [#allocation9], %s486
        %s488 = sand.u32 %s207, 1
        %s489 = smul.addr %s488, 64
        %s490 = scalar_lea.vmem [#allocation10], %s489
        // Predicated region
        $region73: #{tpu_custom_call.1} parent=55 // pred_check
          %p491 = pneg %p220
        $region74: #{tpu_custom_call.1} parent=55 // pred_check_branch
          %493 = sbr.rel (%p491) target = $region76
        $region75: #{tpu_custom_call.1} parent=55 // pred_region
          %494 = dma.done %s487, 1024
        $region76: #{tpu_custom_call.1} parent=55 // pred_fallthru
          _
        %s495 = sand.u32 %s233, 1
        %s496 = scalar_lea.sflag [#allocation12], %s495
        %s497 = sand.u32 %s233, 1
        %s498 = smul.addr %s497, 8
        %s499 = scalar_lea.vmem [#allocation11], %s498
        // Predicated region
        $region77: #{tpu_custom_call.1} parent=55 // pred_check
          %p500 = pneg %p246
        $region78: #{tpu_custom_call.1} parent=55 // pred_check_branch
          %502 = sbr.rel (%p500) target = $region80
        $region79: #{tpu_custom_call.1} parent=55 // pred_region
          %503 = dma.done %s496, 128
        $region80: #{tpu_custom_call.1} parent=55 // pred_fallthru
          _
        %p504 = pneg %p64
        %p505 = pneg %p61
        %p506 = scmp.lt.s32.totalorder %s35, 0
        %s507 = scalar_select %p506, %s35, 0
        %s508 = smul.addr %s507, 2
        %s509 = scalar_lea.vmem %s1, %s508
        %p510 = pneg %p90
        %p511 = pneg %p87
        %s512 = sand.u32 %s31, 1
        %s513 = scalar_lea.sflag [#allocation6], %s512
        %s514 = sand.u32 %s103, 1
        %s515 = smul.addr %s514, 192
        %s516 = scalar_lea.vmem [#allocation5], %s515
        %p517 = pneg %p116
        %p518 = pneg %p113
        %p519 = scmp.lt.s32.totalorder %s36, 1
        %s520 = scalar_select %p519, %s36, 1
        %s521 = smul.addr %s520, 4
        %s522 = smul.addr %s521, 4
        %s523 = scalar_lea.vmem %s3, %s522
        %p524 = pneg %p142
        %p525 = pneg %p139
        %s526 = sand.u32 %s31, 1
        %s527 = scalar_lea.sflag [#allocation6], %s526
        %s528 = sand.u32 %s155, 1
        %s529 = smul.addr %s528, 64
        %s530 = scalar_lea.vmem [#allocation7], %s529
        %p531 = pneg %p168
        %p532 = pneg %p165
        %s533 = sand.u32 %s31, 1
        %s534 = scalar_lea.sflag [#allocation9], %s533
        %s535 = sand.u32 %s181, 1
        %s536 = smul.addr %s535, 64
        %s537 = scalar_lea.vmem [#allocation8], %s536
        %p538 = pneg %p194
        %p539 = pneg %p191
        %s540 = sand.u32 %s31, 1
        %s541 = scalar_lea.sflag [#allocation9], %s540
        %s542 = sand.u32 %s207, 1
        %s543 = smul.addr %s542, 64
        %s544 = scalar_lea.vmem [#allocation10], %s543
        %p545 = pneg %p220
        %p546 = pneg %p217
        %s547 = sand.u32 %s233, 1
        %s548 = scalar_lea.sflag [#allocation12], %s547
        %s549 = sand.u32 %s233, 1
        %s550 = smul.addr %s549, 8
        %s551 = scalar_lea.vmem [#allocation11], %s550
        %p552 = pneg %p246
        %p553 = pneg %p243
        %p554 = pneg %p267
        %p555 = pneg %p264
        %p556 = pneg %p293
        %p557 = pneg %p290
        %s558 = smul.u32 2, %s35
        %p559 = scmp.lt.s32.totalorder %s35, 0
        %s560 = scalar_select %p559, %s35, 0
        %s561 = smul.addr %s560, 2
        %s562 = scalar_lea.vmem %s1, %s561
        %p563 = scmp.lt.s32.totalorder %s36, 1
        %s564 = scalar_select %p563, %s36, 1
        %s565 = smul.addr %s564, 4
        %s566 = smul.addr %s565, 4
        %s567 = scalar_lea.vmem %s3, %s566
        %s568 = smul.u32 2, %s35
        %p570 = scmp.eq.s32.totalorder %s36, 0
        // Predicated region
        $region81: #{tpu_custom_call.1} parent=55 // pred_check
          %p571 = pneg %p570
        $region82: #{tpu_custom_call.1} parent=55 // pred_check_branch
          %573 = sbr.rel (%p571) target = $region84
        $region83: #{tpu_custom_call.1} parent=55 // pred_region
          %v574 = vld [vmem:[#allocation2] sm:$0xff]
          %v575 = vld [vmem:[#allocation2 + $0x8] sm:$0xff]
          %576 = vst [vmem:[#allocation13] sm:$0xff] %v574
          %577 = vst [vmem:[#allocation13 + $0x8] sm:$0xff] %v575
        $region84: #{tpu_custom_call.1} parent=55 // pred_fallthru
          _
        %v578 = vld [vmem:[%s499] sm:$0xff]
        %v579 = vld [vmem:[#allocation13] sm:$0xff]
        %v580 = vld [vmem:[#allocation13 + $0x8] sm:$0xff]
        %581 = vadd.xlane.f32.xlu0 %v579
        %v582 = vpop.xlane.xlu0 %581
        %583 = vadd.xlane.f32.xlu0 %v580
        %v584 = vpop.xlane.xlu0 %583
        %v585 = vrcp.pop 128.0
        %v586 = vmul.f32 %v582, %v585
        %v587 = vmul.f32 %v584, %v585
        %v588 = vsub.f32 %v579, %v586
        %v589 = vsub.f32 %v580, %v587
        %v590 = vmul.f32 %v588, %v588
        %v591 = vmul.f32 %v589, %v589
        %592 = vadd.xlane.f32.xlu0 %v590
        %v593 = vpop.xlane.xlu0 %592
        %594 = vadd.xlane.f32.xlu0 %v591
        %v595 = vpop.xlane.xlu0 %594
        %v596 = vmul.f32 %v593, %v585
        %v597 = vmul.f32 %v595, %v585
        %v598 = vadd.f32 %v596, 1e-05
        %v599 = vadd.f32 %v597, 1e-05
        %v600 = vrsqrt.pop %v598
        %v601 = vrsqrt.pop %v599
        %v602 = vmul.f32 %v588, %v600
        %v603 = vmul.f32 %v589, %v601
        %v604 = vlaneseq
        %v605 = vshrl.u32 %v604, 7
        %v606 = vsub.s32 0, %v605
        %v607 = vrot.slane %v578, %v606
        %v608 = vmul.f32 %v602, %v607
        %v609 = vmul.f32 %v603, %v607
        %v610 = vlaneseq
        %v611 = vshrl.u32 %v610, 7
        %v612 = vsub.s32 1, %v611
        %v613 = vrot.slane %v578, %v612
        %v614 = vadd.f32 %v608, %v613
        %v615 = vadd.f32 %v609, %v613
        %v616 = vpack.c.bf16 %v615, %v614
        %v617 = vld [vmem:[%s463] sm:$0xff]
        %v618 = vld [vmem:[%s463 + $0x8] sm:$0xf]
        %v619 = vld [vmem:[%s463 + $0xc] sm:$0xff]
        %v620 = vld [vmem:[%s463 + $0x14] sm:$0xf]
        %v621 = vld [vmem:[%s463 + $0x18] sm:$0xff]
        %v622 = vld [vmem:[%s463 + $0x20] sm:$0xf]
        %v623 = vld [vmem:[%s463 + $0x24] sm:$0xff]
        %v624 = vld [vmem:[%s463 + $0x2c] sm:$0xf]
        %v625 = vld [vmem:[%s463 + $0x30] sm:$0xff]
        %v626 = vld [vmem:[%s463 + $0x38] sm:$0xf]
        %v627 = vld [vmem:[%s463 + $0x3c] sm:$0xff]
        %v628 = vld [vmem:[%s463 + $0x44] sm:$0xf]
        %v629 = vld [vmem:[%s463 + $0x48] sm:$0xff]
        %v630 = vld [vmem:[%s463 + $0x50] sm:$0xf]
        %v631 = vld [vmem:[%s463 + $0x54] sm:$0xff]
        %v632 = vld [vmem:[%s463 + $0x5c] sm:$0xf]
        %v633 = vld [vmem:[%s463 + $0x60] sm:$0xff]
        %v634 = vld [vmem:[%s463 + $0x68] sm:$0xf]
        %v635 = vld [vmem:[%s463 + $0x6c] sm:$0xff]
        %v636 = vld [vmem:[%s463 + $0x74] sm:$0xf]
        %v637 = vld [vmem:[%s463 + $0x78] sm:$0xff]
        %v638 = vld [vmem:[%s463 + $0x80] sm:$0xf]
        %v639 = vld [vmem:[%s463 + $0x84] sm:$0xff]
        %v640 = vld [vmem:[%s463 + $0x8c] sm:$0xf]
        %v641 = vld [vmem:[%s463 + $0x90] sm:$0xff]
        %v642 = vld [vmem:[%s463 + $0x98] sm:$0xf]
        %v643 = vld [vmem:[%s463 + $0x9c] sm:$0xff]
        %v644 = vld [vmem:[%s463 + $0xa4] sm:$0xf]
        %v645 = vld [vmem:[%s463 + $0xa8] sm:$0xff]
        %v646 = vld [vmem:[%s463 + $0xb0] sm:$0xf]
        %v647 = vld [vmem:[%s463 + $0xb4] sm:$0xff]
        %v648 = vld [vmem:[%s463 + $0xbc] sm:$0xf]
        %v681 = vunpack.c.l.b16 %v617
        %v682 = vunpack.c.h.b16 %v617
        %v683 = vunpack.c.l.b16 %v618
        %v684 = vunpack.c.l.b16 %v619
        %v685 = vunpack.c.h.b16 %v619
        %v686 = vunpack.c.l.b16 %v620
        %v687 = vunpack.c.l.b16 %v621
        %v688 = vunpack.c.h.b16 %v621
        %v689 = vunpack.c.l.b16 %v622
        %v690 = vunpack.c.l.b16 %v623
        %v691 = vunpack.c.h.b16 %v623
        %v692 = vunpack.c.l.b16 %v624
        %v693 = vunpack.c.l.b16 %v625
        %v694 = vunpack.c.h.b16 %v625
        %v695 = vunpack.c.l.b16 %v626
        %v696 = vunpack.c.l.b16 %v627
        %v697 = vunpack.c.h.b16 %v627
        %v698 = vunpack.c.l.b16 %v628
        %v699 = vunpack.c.l.b16 %v629
        %v700 = vunpack.c.h.b16 %v629
        %v701 = vunpack.c.l.b16 %v630
        %v702 = vunpack.c.l.b16 %v631
        %v703 = vunpack.c.h.b16 %v631
        %v704 = vunpack.c.l.b16 %v632
        %v705 = vunpack.c.l.b16 %v633
        %v706 = vunpack.c.h.b16 %v633
        %v707 = vunpack.c.l.b16 %v634
        %v708 = vunpack.c.l.b16 %v635
        %v709 = vunpack.c.h.b16 %v635
        %v710 = vunpack.c.l.b16 %v636
        %v711 = vunpack.c.l.b16 %v637
        %v712 = vunpack.c.h.b16 %v637
        %v713 = vunpack.c.l.b16 %v638
        %v714 = vunpack.c.l.b16 %v639
        %v715 = vunpack.c.h.b16 %v639
        %v716 = vunpack.c.l.b16 %v640
        %v717 = vunpack.c.l.b16 %v641
        %v718 = vunpack.c.h.b16 %v641
        %v719 = vunpack.c.l.b16 %v642
        %v720 = vunpack.c.l.b16 %v643
        %v721 = vunpack.c.h.b16 %v643
        %v722 = vunpack.c.l.b16 %v644
        %v723 = vunpack.c.l.b16 %v645
        %v724 = vunpack.c.h.b16 %v645
        %v725 = vunpack.c.l.b16 %v646
        %v726 = vunpack.c.l.b16 %v647
        %v727 = vunpack.c.h.b16 %v647
        %v728 = vunpack.c.l.b16 %v648
        %v729 = vpack.c.b16 %v684, %v681
        %v730 = vpack.c.b16 %v685, %v682
        %v731 = vpack.c.b16 %v686, %v683
        %v732 = vpack.c.b16 %v690, %v687
        %v733 = vpack.c.b16 %v691, %v688
        %v734 = vpack.c.b16 %v692, %v689
        %v735 = vpack.c.b16 %v696, %v693
        %v736 = vpack.c.b16 %v697, %v694
        %v737 = vpack.c.b16 %v698, %v695
        %v738 = vpack.c.b16 %v702, %v699
        %v739 = vpack.c.b16 %v703, %v700
        %v740 = vpack.c.b16 %v704, %v701
        %v741 = vpack.c.b16 %v708, %v705
        %v742 = vpack.c.b16 %v709, %v706
        %v743 = vpack.c.b16 %v710, %v707
        %v744 = vpack.c.b16 %v714, %v711
        %v745 = vpack.c.b16 %v715, %v712
        %v746 = vpack.c.b16 %v716, %v713
        %v747 = vpack.c.b16 %v720, %v717
        %v748 = vpack.c.b16 %v721, %v718
        %v749 = vpack.c.b16 %v722, %v719
        %v750 = vpack.c.b16 %v726, %v723
        %v751 = vpack.c.b16 %v727, %v724
        %v752 = vpack.c.b16 %v728, %v725
        %777 = vmatprep.subr.bf16.mxu0 %v751
        %778 = vmatpush1.bf16.msra.mxu0 %v750
        %779 = vmatprep.subr.bf16.mxu0 %v748
        %780 = vmatpush1.bf16.msra.mxu0 %v747
        %781 = vmatprep.subr.bf16.mxu0 %v745
        %782 = vmatpush1.bf16.msra.mxu0 %v744
        %783 = vmatprep.subr.bf16.mxu0 %v742
        %784 = vmatpush1.bf16.msra.mxu0 %v741
        %785 = vmatprep.subr.bf16.mxu0 %v739
        %786 = vmatpush1.bf16.msra.mxu0 %v738
        %787 = vmatprep.subr.bf16.mxu0 %v736
        %788 = vmatpush1.bf16.msra.mxu0 %v735
        %789 = vmatprep.subr.bf16.mxu0 %v733
        %790 = vmatpush1.bf16.msra.mxu0 %v732
        %791 = vmatprep.subr.bf16.mxu0 %v730
        %792 = vmatpush1.bf16.msra.mxu0 %v729
        %793 = vmatprep.subr.bf16.mxu0 0
        %794 = vmatpush2.bf16.msra.mxu0 0
        %795 = vmatprep.subr.bf16.mxu0 0
        %796 = vmatpush2.bf16.msra.mxu0 0
        %797 = vmatprep.subr.bf16.mxu0 0
        %798 = vmatpush2.bf16.msra.mxu0 0
        %799 = vmatprep.subr.bf16.mxu0 0
        %800 = vmatpush2.bf16.msra.mxu0 0
        %801 = vmatprep.subr.bf16.mxu0 0
        %802 = vmatpush2.bf16.msra.mxu0 0
        %803 = vmatprep.subr.bf16.mxu0 0
        %804 = vmatpush2.bf16.msra.mxu0 0
        %805 = vmatprep.subr.bf16.mxu0 0
        %806 = vmatpush2.bf16.msra.mxu0 0
        %807 = vmatprep.subr.bf16.mxu0 0
        %808 = vmatpush2.bf16.msra.mxu0 0
        %809 = vmatprep.mubr.bf16.mxu0 0
        %810 = vmatmul.mubr.bf16.gmra.mxu0 %v616
        %v811 = vpop.f32.mrf.mxu0
        %v812 = vadd.f32 0.0, %v811
        %v813 = vpop.f32.mrf.mxu0
        %v814 = vadd.f32 0.0, %v813
        %v815 = vpop.f32.mrf.mxu0
        %v816 = vadd.f32 0.0, %v815
        %v817 = vpop.f32.mrf.mxu0
        %v818 = vadd.f32 0.0, %v817
        %819 = vdwg.mxu0
        %820 = vmatprep.subr.bf16.mxu0 0
        %821 = vmatpush1.bf16.msra.mxu0 %v752
        %822 = vmatprep.subr.bf16.mxu0 0
        %823 = vmatpush1.bf16.msra.mxu0 %v749
        %824 = vmatprep.subr.bf16.mxu0 0
        %825 = vmatpush1.bf16.msra.mxu0 %v746
        %826 = vmatprep.subr.bf16.mxu0 0
        %827 = vmatpush1.bf16.msra.mxu0 %v743
        %828 = vmatprep.subr.bf16.mxu0 0
        %829 = vmatpush1.bf16.msra.mxu0 %v740
        %830 = vmatprep.subr.bf16.mxu0 0
        %831 = vmatpush1.bf16.msra.mxu0 %v737
        %832 = vmatprep.subr.bf16.mxu0 0
        %833 = vmatpush1.bf16.msra.mxu0 %v734
        %834 = vmatprep.subr.bf16.mxu0 0
        %835 = vmatpush1.bf16.msra.mxu0 %v731
        %836 = vmatprep.subr.bf16.mxu0 0
        %837 = vmatpush2.bf16.msra.mxu0 0
        %838 = vmatprep.subr.bf16.mxu0 0
        %839 = vmatpush2.bf16.msra.mxu0 0
        %840 = vmatprep.subr.bf16.mxu0 0
        %841 = vmatpush2.bf16.msra.mxu0 0
        %842 = vmatprep.subr.bf16.mxu0 0
        %843 = vmatpush2.bf16.msra.mxu0 0
        %844 = vmatprep.subr.bf16.mxu0 0
        %845 = vmatpush2.bf16.msra.mxu0 0
        %846 = vmatprep.subr.bf16.mxu0 0
        %847 = vmatpush2.bf16.msra.mxu0 0
        %848 = vmatprep.subr.bf16.mxu0 0
        %849 = vmatpush2.bf16.msra.mxu0 0
        %850 = vmatprep.subr.bf16.mxu0 0
        %851 = vmatpush2.bf16.msra.mxu0 0
        %852 = vmatprep.mubr.bf16.mxu0 0
        %853 = vmatmul.mubr.bf16.gmra.mxu0 %v616
        %v854 = vpop.f32.mrf.mxu0
        %v855 = vadd.f32 0.0, %v854
        %v856 = vpop.f32.mrf.mxu0
        %v857 = vpop.f32.mrf.mxu0
        %v858 = vadd.f32 0.0, %v857
        %v859 = vpop.f32.mrf.mxu0
        %860 = vdwg.mxu0
        %v861 = vld [vmem:[%s562] sm:$0x3]
        %v862 = vpack.c.bf16 %v861, %v861
        %v863 = vld [vmem:[%s567] sm:$0xf]
        %v864 = vld [vmem:[%s567 + $0x4] sm:$0xf]
        %v865 = vld [vmem:[%s567 + $0x8] sm:$0xf]
        %v866 = vld [vmem:[%s567 + $0xc] sm:$0xf]
        %v871 = vunpack.c.l.b16 %v863
        %v872 = vunpack.c.l.b16 %v864
        %v873 = vunpack.c.l.b16 %v865
        %v874 = vunpack.c.l.b16 %v866
        %v875 = vpack.c.b16 %v872, %v871
        %v876 = vpack.c.b16 %v874, %v873
        %vm879 = vcmask 261120
        %v881 = vsel %vm879, %v862, 0
        %883 = vmatprep.subr.bf16.mxu0 0
        %884 = vmatpush1.bf16.msra.mxu0 0
        %885 = vmatprep.subr.bf16.mxu0 0
        %886 = vmatpush1.bf16.msra.mxu0 0
        %887 = vmatprep.subr.bf16.mxu0 0
        %888 = vmatpush1.bf16.msra.mxu0 0
        %889 = vmatprep.subr.bf16.mxu0 0
        %890 = vmatpush1.bf16.msra.mxu0 0
        %891 = vmatprep.subr.bf16.mxu0 0
        %892 = vmatpush1.bf16.msra.mxu0 0
        %893 = vmatprep.subr.bf16.mxu0 0
        %894 = vmatpush1.bf16.msra.mxu0 0
        %895 = vmatprep.subr.bf16.mxu0 0
        %896 = vmatpush1.bf16.msra.mxu0 %v876
        %897 = vmatprep.subr.bf16.mxu0 0
        %898 = vmatpush1.bf16.msra.mxu0 %v875
        %899 = vmatprep.subr.bf16.mxu0 0
        %900 = vmatpush2.bf16.msra.mxu0 0
        %901 = vmatprep.subr.bf16.mxu0 0
        %902 = vmatpush2.bf16.msra.mxu0 0
        %903 = vmatprep.subr.bf16.mxu0 0
        %904 = vmatpush2.bf16.msra.mxu0 0
        %905 = vmatprep.subr.bf16.mxu0 0
        %906 = vmatpush2.bf16.msra.mxu0 0
        %907 = vmatprep.subr.bf16.mxu0 0
        %908 = vmatpush2.bf16.msra.mxu0 0
        %909 = vmatprep.subr.bf16.mxu0 0
        %910 = vmatpush2.bf16.msra.mxu0 0
        %911 = vmatprep.subr.bf16.mxu0 0
        %912 = vmatpush2.bf16.msra.mxu0 0
        %913 = vmatprep.subr.bf16.mxu0 0
        %914 = vmatpush2.bf16.msra.mxu0 0
        %915 = vmatprep.mubr.bf16.mxu0 0
        %916 = vmatmul.mubr.bf16.gmra.mxu0 %v881
        %v917 = vpop.f32.mrf.mxu0
        %v918 = vadd.f32 0.0, %v917
        %v919 = vpop.f32.mrf.mxu0
        %v920 = vpop.f32.mrf.mxu0
        %v921 = vpop.f32.mrf.mxu0
        %922 = vdwg.mxu0
        %v925 = vunpack.c.l.s4 1966171168
        %v926 = vunpack.c.0.s8 %v925
        %v927 = vlaneseq
        %v928 = vshrl.u32 %v927, 7
        %v929 = vsub.s32 %v926, %v928
        %v930 = vrot.slane %v918, %v929
        %v931 = vcombine.high %v930, %v930
        %v933 = vunpack.c.l.s4 1966171168
        %v934 = vunpack.c.0.s8 %v933
        %v935 = vlaneseq
        %v936 = vshrl.u32 %v935, 7
        %v937 = vsub.s32 %v934, %v936
        %v938 = vrot.slane %v930, %v937
        %v940 = vunpack.c.l.s4 1966171168
        %v941 = vunpack.c.0.s8 %v940
        %v942 = vlaneseq
        %v943 = vshrl.u32 %v942, 7
        %v944 = vsub.s32 %v941, %v943
        %v945 = vrot.slane %v931, %v944
        %v946 = vlaneseq
        %v947 = vshrl.u32 %v946, 7
        %v948 = vsub.s32 0, %v947
        %v949 = vrot.slane %v938, %v948
        %v950 = vlaneseq
        %v951 = vshrl.u32 %v950, 7
        %v952 = vsub.s32 0, %v951
        %v953 = vrot.slane %v945, %v952
        %v956 = vadd.f32 %v812, %v949
        %v957 = vadd.f32 %v816, %v953
        %v958 = vmul.f32 %v956, 0.17677669
        %v959 = vmul.f32 %v957, 0.17677669
        %v960 = vpack.c.bf16 %v958, %v958
        %v961 = vpack.c.bf16 %v959, %v959
        %v962 = vpack.c.bf16 %v814, %v814
        %v963 = vpack.c.bf16 %v818, %v818
        %v964 = vpack.c.bf16 %v855, %v855
        %v965 = vpack.c.bf16 %v858, %v858
        %v967 = vsel %vm879, %v960, 0
        %v970 = vsel %vm879, %v962, 0
        %972 = vmatprep.subr.bf16.mxu0 0
        %973 = vmatpush1.bf16.xpose.msra.mxu0 0
        %974 = vmatprep.subr.bf16.mxu0 0
        %975 = vmatpush1.bf16.xpose.msra.mxu0 0
        %976 = vmatprep.subr.bf16.mxu0 0
        %977 = vmatpush1.bf16.xpose.msra.mxu0 0
        %978 = vmatprep.subr.bf16.mxu0 0
        %979 = vmatpush1.bf16.xpose.msra.mxu0 0
        %980 = vmatprep.subr.bf16.mxu0 0
        %981 = vmatpush1.bf16.xpose.msra.mxu0 0
        %982 = vmatprep.subr.bf16.mxu0 0
        %983 = vmatpush1.bf16.xpose.msra.mxu0 0
        %984 = vmatprep.subr.bf16.mxu0 0
        %985 = vmatpush1.bf16.xpose.msra.mxu0 0
        %986 = vmatprep.subr.bf16.mxu0 0
        %987 = vmatpush1.bf16.xpose.msra.mxu0 %v970
        %988 = vmatprep.subr.bf16.mxu0 0
        %989 = vmatpush2.bf16.xpose.msra.mxu0 0
        %990 = vmatprep.subr.bf16.mxu0 0
        %991 = vmatpush2.bf16.xpose.msra.mxu0 0
        %992 = vmatprep.subr.bf16.mxu0 0
        %993 = vmatpush2.bf16.xpose.msra.mxu0 0
        %994 = vmatprep.subr.bf16.mxu0 0
        %995 = vmatpush2.bf16.xpose.msra.mxu0 0
        %996 = vmatprep.subr.bf16.mxu0 0
        %997 = vmatpush2.bf16.xpose.msra.mxu0 0
        %998 = vmatprep.subr.bf16.mxu0 0
        %999 = vmatpush2.bf16.xpose.msra.mxu0 0
        %1000 = vmatprep.subr.bf16.mxu0 0
        %1001 = vmatpush2.bf16.xpose.msra.mxu0 0
        %1002 = vmatprep.subr.bf16.mxu0 0
        %1003 = vmatpush2.bf16.xpose.msra.mxu0 0
        %1004 = vmatprep.mubr.bf16.mxu0 0
        %1005 = vmatmul.mubr.bf16.gmra.mxu0 %v967
        %v1006 = vpop.f32.mrf.mxu0
        %v1007 = vadd.f32 0.0, %v1006
        %v1008 = vpop.f32.mrf.mxu0
        %v1009 = vpop.f32.mrf.mxu0
        %v1010 = vpop.f32.mrf.mxu0
        %1011 = vdwg.mxu0
        %v1013 = vsel %vm879, %v961, 0
        %v1016 = vsel %vm879, %v963, 0
        %1018 = vmatprep.subr.bf16.mxu0 0
        %1019 = vmatpush1.bf16.xpose.msra.mxu0 0
        %1020 = vmatprep.subr.bf16.mxu0 0
        %1021 = vmatpush1.bf16.xpose.msra.mxu0 0
        %1022 = vmatprep.subr.bf16.mxu0 0
        %1023 = vmatpush1.bf16.xpose.msra.mxu0 0
        %1024 = vmatprep.subr.bf16.mxu0 0
        %1025 = vmatpush1.bf16.xpose.msra.mxu0 0
        %1026 = vmatprep.subr.bf16.mxu0 0
        %1027 = vmatpush1.bf16.xpose.msra.mxu0 0
        %1028 = vmatprep.subr.bf16.mxu0 0
        %1029 = vmatpush1.bf16.xpose.msra.mxu0 0
        %1030 = vmatprep.subr.bf16.mxu0 0
        %1031 = vmatpush1.bf16.xpose.msra.mxu0 0
        %1032 = vmatprep.subr.bf16.mxu0 0
        %1033 = vmatpush1.bf16.xpose.msra.mxu0 %v1016
        %1034 = vmatprep.subr.bf16.mxu0 0
        %1035 = vmatpush2.bf16.xpose.msra.mxu0 0
        %1036 = vmatprep.subr.bf16.mxu0 0
        %1037 = vmatpush2.bf16.xpose.msra.mxu0 0
        %1038 = vmatprep.subr.bf16.mxu0 0
        %1039 = vmatpush2.bf16.xpose.msra.mxu0 0
        %1040 = vmatprep.subr.bf16.mxu0 0
        %1041 = vmatpush2.bf16.xpose.msra.mxu0 0
        %1042 = vmatprep.subr.bf16.mxu0 0
        %1043 = vmatpush2.bf16.xpose.msra.mxu0 0
        %1044 = vmatprep.subr.bf16.mxu0 0
        %1045 = vmatpush2.bf16.xpose.msra.mxu0 0
        %1046 = vmatprep.subr.bf16.mxu0 0
        %1047 = vmatpush2.bf16.xpose.msra.mxu0 0
        %1048 = vmatprep.subr.bf16.mxu0 0
        %1049 = vmatpush2.bf16.xpose.msra.mxu0 0
        %1050 = vmatprep.mubr.bf16.mxu0 0
        %1051 = vmatmul.mubr.bf16.gmra.mxu0 %v1013
        %v1052 = vpop.f32.mrf.mxu0
        %v1053 = vadd.f32 0.0, %v1052
        %v1054 = vpop.f32.mrf.mxu0
        %v1055 = vpop.f32.mrf.mxu0
        %v1056 = vpop.f32.mrf.mxu0
        %1057 = vdwg.mxu0
        %vm1058 = vcmask 64512
        %v1059 = vsel %vm1058, %v1007, -inf
        %1060 = vmax.xlane.f32.xlu0 %v1059
        %v1061 = vpop.xlane.xlu0 %1060
        %v1062 = vsel %vm1058, %v1053, -inf
        %1063 = vmax.xlane.f32.xlu0 %v1062
        %v1064 = vpop.xlane.xlu0 %1063
        %v1065 = vsub.f32 %v1007, %v1061
        %v1066 = vsub.f32 %v1053, %v1064
        %v1067 = vmul.f32 %v1065, 1.442695
        %v1068 = vpow.pop %v1067
        %v1069 = vmul.f32 %v1066, 1.442695
        %v1070 = vpow.pop %v1069
        %v1071 = vsel %vm1058, %v1068, 0.0
        %1072 = vadd.xlane.f32.xlu0 %v1071
        %v1073 = vpop.xlane.xlu0 %1072
        %v1074 = vsel %vm1058, %v1070, 0.0
        %1075 = vadd.xlane.f32.xlu0 %v1074
        %v1076 = vpop.xlane.xlu0 %1075
        %v1077 = vrcp.pop %v1073
        %v1078 = vrcp.pop %v1076
        %v1079 = vmul.f32 %v1068, %v1077
        %v1080 = vmul.f32 %v1070, %v1078
        %v1081 = vpack.c.bf16 %v1079, %v1079
        %v1082 = vpack.c.bf16 %v1080, %v1080
        %v1084 = vsel %vm1058, %v1081, 0
        %vm1086 = vcmask 1043456
        %v1088 = vsel %vm1086, %v964, 0
        %1090 = vmatprep.subr.bf16.mxu0 0
        %1091 = vmatpush1.bf16.msra.mxu0 0
        %1092 = vmatprep.subr.bf16.mxu0 0
        %1093 = vmatpush1.bf16.msra.mxu0 0
        %1094 = vmatprep.subr.bf16.mxu0 0
        %1095 = vmatpush1.bf16.msra.mxu0 0
        %1096 = vmatprep.subr.bf16.mxu0 0
        %1097 = vmatpush1.bf16.msra.mxu0 0
        %1098 = vmatprep.subr.bf16.mxu0 0
        %1099 = vmatpush1.bf16.msra.mxu0 0
        %1100 = vmatprep.subr.bf16.mxu0 0
        %1101 = vmatpush1.bf16.msra.mxu0 0
        %1102 = vmatprep.subr.bf16.mxu0 0
        %1103 = vmatpush1.bf16.msra.mxu0 0
        %1104 = vmatprep.subr.bf16.mxu0 0
        %1105 = vmatpush1.bf16.msra.mxu0 %v1088
        %1106 = vmatprep.subr.bf16.mxu0 0
        %1107 = vmatpush2.bf16.msra.mxu0 0
        %1108 = vmatprep.subr.bf16.mxu0 0
        %1109 = vmatpush2.bf16.msra.mxu0 0
        %1110 = vmatprep.subr.bf16.mxu0 0
        %1111 = vmatpush2.bf16.msra.mxu0 0
        %1112 = vmatprep.subr.bf16.mxu0 0
        %1113 = vmatpush2.bf16.msra.mxu0 0
        %1114 = vmatprep.subr.bf16.mxu0 0
        %1115 = vmatpush2.bf16.msra.mxu0 0
        %1116 = vmatprep.subr.bf16.mxu0 0
        %1117 = vmatpush2.bf16.msra.mxu0 0
        %1118 = vmatprep.subr.bf16.mxu0 0
        %1119 = vmatpush2.bf16.msra.mxu0 0
        %1120 = vmatprep.subr.bf16.mxu0 0
        %1121 = vmatpush2.bf16.msra.mxu0 0
        %1122 = vmatprep.mubr.bf16.mxu0 0
        %1123 = vmatmul.mubr.bf16.gmra.mxu0 %v1084
        %v1124 = vpop.f32.mrf.mxu0
        %v1125 = vadd.f32 0.0, %v1124
        %v1126 = vpop.f32.mrf.mxu0
        %v1127 = vpop.f32.mrf.mxu0
        %v1128 = vpop.f32.mrf.mxu0
        %1129 = vdwg.mxu0
        %v1131 = vsel %vm1058, %v1082, 0
        %v1134 = vsel %vm1086, %v965, 0
        %1136 = vmatprep.subr.bf16.mxu0 0
        %1137 = vmatpush1.bf16.msra.mxu0 0
        %1138 = vmatprep.subr.bf16.mxu0 0
        %1139 = vmatpush1.bf16.msra.mxu0 0
        %1140 = vmatprep.subr.bf16.mxu0 0
        %1141 = vmatpush1.bf16.msra.mxu0 0
        %1142 = vmatprep.subr.bf16.mxu0 0
        %1143 = vmatpush1.bf16.msra.mxu0 0
        %1144 = vmatprep.subr.bf16.mxu0 0
        %1145 = vmatpush1.bf16.msra.mxu0 0
        %1146 = vmatprep.subr.bf16.mxu0 0
        %1147 = vmatpush1.bf16.msra.mxu0 0
        %1148 = vmatprep.subr.bf16.mxu0 0
        %1149 = vmatpush1.bf16.msra.mxu0 0
        %1150 = vmatprep.subr.bf16.mxu0 0
        %1151 = vmatpush1.bf16.msra.mxu0 %v1134
        %1152 = vmatprep.subr.bf16.mxu0 0
        %1153 = vmatpush2.bf16.msra.mxu0 0
        %1154 = vmatprep.subr.bf16.mxu0 0
        %1155 = vmatpush2.bf16.msra.mxu0 0
        %1156 = vmatprep.subr.bf16.mxu0 0
        %1157 = vmatpush2.bf16.msra.mxu0 0
        %1158 = vmatprep.subr.bf16.mxu0 0
        %1159 = vmatpush2.bf16.msra.mxu0 0
        %1160 = vmatprep.subr.bf16.mxu0 0
        %1161 = vmatpush2.bf16.msra.mxu0 0
        %1162 = vmatprep.subr.bf16.mxu0 0
        %1163 = vmatpush2.bf16.msra.mxu0 0
        %1164 = vmatprep.subr.bf16.mxu0 0
        %1165 = vmatpush2.bf16.msra.mxu0 0
        %1166 = vmatprep.subr.bf16.mxu0 0
        %1167 = vmatpush2.bf16.msra.mxu0 0
        %1168 = vmatprep.mubr.bf16.mxu0 0
        %1169 = vmatmul.mubr.bf16.gmra.mxu0 %v1131
        %v1170 = vpop.f32.mrf.mxu0
        %v1171 = vadd.f32 0.0, %v1170
        %v1172 = vpop.f32.mrf.mxu0
        %v1173 = vpop.f32.mrf.mxu0
        %v1174 = vpop.f32.mrf.mxu0
        %1175 = vdwg.mxu0
        %1177 = vrot.lane.b32.xlu0 %v960, 96
        %v1178 = vpop.permute.xlu0 %1177
        %1180 = vrot.lane.b32.xlu0 %v962, 96
        %v1181 = vpop.permute.xlu0 %1180
        %v1183 = vsel %vm879, %v1178, 0
        %v1186 = vsel %vm879, %v1181, 0
        %1188 = vmatprep.subr.bf16.mxu0 0
        %1189 = vmatpush1.bf16.xpose.msra.mxu0 0
        %1190 = vmatprep.subr.bf16.mxu0 0
        %1191 = vmatpush1.bf16.xpose.msra.mxu0 0
        %1192 = vmatprep.subr.bf16.mxu0 0
        %1193 = vmatpush1.bf16.xpose.msra.mxu0 0
        %1194 = vmatprep.subr.bf16.mxu0 0
        %1195 = vmatpush1.bf16.xpose.msra.mxu0 0
        %1196 = vmatprep.subr.bf16.mxu0 0
        %1197 = vmatpush1.bf16.xpose.msra.mxu0 0
        %1198 = vmatprep.subr.bf16.mxu0 0
        %1199 = vmatpush1.bf16.xpose.msra.mxu0 0
        %1200 = vmatprep.subr.bf16.mxu0 0
        %1201 = vmatpush1.bf16.xpose.msra.mxu0 0
        %1202 = vmatprep.subr.bf16.mxu0 0
        %1203 = vmatpush1.bf16.xpose.msra.mxu0 %v1186
        %1204 = vmatprep.subr.bf16.mxu0 0
        %1205 = vmatpush2.bf16.xpose.msra.mxu0 0
        %1206 = vmatprep.subr.bf16.mxu0 0
        %1207 = vmatpush2.bf16.xpose.msra.mxu0 0
        %1208 = vmatprep.subr.bf16.mxu0 0
        %1209 = vmatpush2.bf16.xpose.msra.mxu0 0
        %1210 = vmatprep.subr.bf16.mxu0 0
        %1211 = vmatpush2.bf16.xpose.msra.mxu0 0
        %1212 = vmatprep.subr.bf16.mxu0 0
        %1213 = vmatpush2.bf16.xpose.msra.mxu0 0
        %1214 = vmatprep.subr.bf16.mxu0 0
        %1215 = vmatpush2.bf16.xpose.msra.mxu0 0
        %1216 = vmatprep.subr.bf16.mxu0 0
        %1217 = vmatpush2.bf16.xpose.msra.mxu0 0
        %1218 = vmatprep.subr.bf16.mxu0 0
        %1219 = vmatpush2.bf16.xpose.msra.mxu0 0
        %1220 = vmatprep.mubr.bf16.mxu0 0
        %1221 = vmatmul.mubr.bf16.gmra.mxu0 %v1183
        %v1222 = vpop.f32.mrf.mxu0
        %v1223 = vadd.f32 0.0, %v1222
        %v1224 = vpop.f32.mrf.mxu0
        %v1225 = vpop.f32.mrf.mxu0
        %v1226 = vpop.f32.mrf.mxu0
        %1227 = vdwg.mxu0
        %1229 = vrot.lane.b32.xlu0 %v961, 96
        %v1230 = vpop.permute.xlu0 %1229
        %1232 = vrot.lane.b32.xlu0 %v963, 96
        %v1233 = vpop.permute.xlu0 %1232
        %v1235 = vsel %vm879, %v1230, 0
        %v1238 = vsel %vm879, %v1233, 0
        %1240 = vmatprep.subr.bf16.mxu0 0
        %1241 = vmatpush1.bf16.xpose.msra.mxu0 0
        %1242 = vmatprep.subr.bf16.mxu0 0
        %1243 = vmatpush1.bf16.xpose.msra.mxu0 0
        %1244 = vmatprep.subr.bf16.mxu0 0
        %1245 = vmatpush1.bf16.xpose.msra.mxu0 0
        %1246 = vmatprep.subr.bf16.mxu0 0
        %1247 = vmatpush1.bf16.xpose.msra.mxu0 0
        %1248 = vmatprep.subr.bf16.mxu0 0
        %1249 = vmatpush1.bf16.xpose.msra.mxu0 0
        %1250 = vmatprep.subr.bf16.mxu0 0
        %1251 = vmatpush1.bf16.xpose.msra.mxu0 0
        %1252 = vmatprep.subr.bf16.mxu0 0
        %1253 = vmatpush1.bf16.xpose.msra.mxu0 0
        %1254 = vmatprep.subr.bf16.mxu0 0
        %1255 = vmatpush1.bf16.xpose.msra.mxu0 %v1238
        %1256 = vmatprep.subr.bf16.mxu0 0
        %1257 = vmatpush2.bf16.xpose.msra.mxu0 0
        %1258 = vmatprep.subr.bf16.mxu0 0
        %1259 = vmatpush2.bf16.xpose.msra.mxu0 0
        %1260 = vmatprep.subr.bf16.mxu0 0
        %1261 = vmatpush2.bf16.xpose.msra.mxu0 0
        %1262 = vmatprep.subr.bf16.mxu0 0
        %1263 = vmatpush2.bf16.xpose.msra.mxu0 0
        %1264 = vmatprep.subr.bf16.mxu0 0
        %1265 = vmatpush2.bf16.xpose.msra.mxu0 0
        %1266 = vmatprep.subr.bf16.mxu0 0
        %1267 = vmatpush2.bf16.xpose.msra.mxu0 0
        %1268 = vmatprep.subr.bf16.mxu0 0
        %1269 = vmatpush2.bf16.xpose.msra.mxu0 0
        %1270 = vmatprep.subr.bf16.mxu0 0
        %1271 = vmatpush2.bf16.xpose.msra.mxu0 0
        %1272 = vmatprep.mubr.bf16.mxu0 0
        %1273 = vmatmul.mubr.bf16.gmra.mxu0 %v1235
        %v1274 = vpop.f32.mrf.mxu0
        %v1275 = vadd.f32 0.0, %v1274
        %v1276 = vpop.f32.mrf.mxu0
        %v1277 = vpop.f32.mrf.mxu0
        %v1278 = vpop.f32.mrf.mxu0
        %1279 = vdwg.mxu0
        %v1280 = vsel %vm1058, %v1223, -inf
        %1281 = vmax.xlane.f32.xlu0 %v1280
        %v1282 = vpop.xlane.xlu0 %1281
        %v1283 = vsel %vm1058, %v1275, -inf
        %1284 = vmax.xlane.f32.xlu0 %v1283
        %v1285 = vpop.xlane.xlu0 %1284
        %v1286 = vsub.f32 %v1223, %v1282
        %v1287 = vsub.f32 %v1275, %v1285
        %v1288 = vmul.f32 %v1286, 1.442695
        %v1289 = vpow.pop %v1288
        %v1290 = vmul.f32 %v1287, 1.442695
        %v1291 = vpow.pop %v1290
        %v1292 = vsel %vm1058, %v1289, 0.0
        %1293 = vadd.xlane.f32.xlu0 %v1292
        %v1294 = vpop.xlane.xlu0 %1293
        %v1295 = vsel %vm1058, %v1291, 0.0
        %1296 = vadd.xlane.f32.xlu0 %v1295
        %v1297 = vpop.xlane.xlu0 %1296
        %v1298 = vrcp.pop %v1294
        %v1299 = vrcp.pop %v1297
        %v1300 = vmul.f32 %v1289, %v1298
        %v1301 = vmul.f32 %v1291, %v1299
        %v1302 = vpack.c.bf16 %v1300, %v1300
        %v1303 = vpack.c.bf16 %v1301, %v1301
        %1305 = vrot.lane.b32.xlu0 %v964, 96
        %v1306 = vpop.permute.xlu0 %1305
        %v1308 = vsel %vm1058, %v1302, 0
        %v1311 = vsel %vm1086, %v1306, 0
        %1313 = vmatprep.subr.bf16.mxu0 0
        %1314 = vmatpush1.bf16.msra.mxu0 0
        %1315 = vmatprep.subr.bf16.mxu0 0
        %1316 = vmatpush1.bf16.msra.mxu0 0
        %1317 = vmatprep.subr.bf16.mxu0 0
        %1318 = vmatpush1.bf16.msra.mxu0 0
        %1319 = vmatprep.subr.bf16.mxu0 0
        %1320 = vmatpush1.bf16.msra.mxu0 0
        %1321 = vmatprep.subr.bf16.mxu0 0
        %1322 = vmatpush1.bf16.msra.mxu0 0
        %1323 = vmatprep.subr.bf16.mxu0 0
        %1324 = vmatpush1.bf16.msra.mxu0 0
        %1325 = vmatprep.subr.bf16.mxu0 0
        %1326 = vmatpush1.bf16.msra.mxu0 0
        %1327 = vmatprep.subr.bf16.mxu0 0
        %1328 = vmatpush1.bf16.msra.mxu0 %v1311
        %1329 = vmatprep.subr.bf16.mxu0 0
        %1330 = vmatpush2.bf16.msra.mxu0 0
        %1331 = vmatprep.subr.bf16.mxu0 0
        %1332 = vmatpush2.bf16.msra.mxu0 0
        %1333 = vmatprep.subr.bf16.mxu0 0
        %1334 = vmatpush2.bf16.msra.mxu0 0
        %1335 = vmatprep.subr.bf16.mxu0 0
        %1336 = vmatpush2.bf16.msra.mxu0 0
        %1337 = vmatprep.subr.bf16.mxu0 0
        %1338 = vmatpush2.bf16.msra.mxu0 0
        %1339 = vmatprep.subr.bf16.mxu0 0
        %1340 = vmatpush2.bf16.msra.mxu0 0
        %1341 = vmatprep.subr.bf16.mxu0 0
        %1342 = vmatpush2.bf16.msra.mxu0 0
        %1343 = vmatprep.subr.bf16.mxu0 0
        %1344 = vmatpush2.bf16.msra.mxu0 0
        %1345 = vmatprep.mubr.bf16.mxu0 0
        %1346 = vmatmul.mubr.bf16.gmra.mxu0 %v1308
        %v1347 = vpop.f32.mrf.mxu0
        %v1348 = vadd.f32 0.0, %v1347
        %v1349 = vpop.f32.mrf.mxu0
        %v1350 = vpop.f32.mrf.mxu0
        %v1351 = vpop.f32.mrf.mxu0
        %1352 = vdwg.mxu0
        %1354 = vrot.lane.b32.xlu0 %v965, 96
        %v1355 = vpop.permute.xlu0 %1354
        %v1357 = vsel %vm1058, %v1303, 0
        %v1360 = vsel %vm1086, %v1355, 0
        %1362 = vmatprep.subr.bf16.mxu0 0
        %1363 = vmatpush1.bf16.msra.mxu0 0
        %1364 = vmatprep.subr.bf16.mxu0 0
        %1365 = vmatpush1.bf16.msra.mxu0 0
        %1366 = vmatprep.subr.bf16.mxu0 0
        %1367 = vmatpush1.bf16.msra.mxu0 0
        %1368 = vmatprep.subr.bf16.mxu0 0
        %1369 = vmatpush1.bf16.msra.mxu0 0
        %1370 = vmatprep.subr.bf16.mxu0 0
        %1371 = vmatpush1.bf16.msra.mxu0 0
        %1372 = vmatprep.subr.bf16.mxu0 0
        %1373 = vmatpush1.bf16.msra.mxu0 0
        %1374 = vmatprep.subr.bf16.mxu0 0
        %1375 = vmatpush1.bf16.msra.mxu0 0
        %1376 = vmatprep.subr.bf16.mxu0 0
        %1377 = vmatpush1.bf16.msra.mxu0 %v1360
        %1378 = vmatprep.subr.bf16.mxu0 0
        %1379 = vmatpush2.bf16.msra.mxu0 0
        %1380 = vmatprep.subr.bf16.mxu0 0
        %1381 = vmatpush2.bf16.msra.mxu0 0
        %1382 = vmatprep.subr.bf16.mxu0 0
        %1383 = vmatpush2.bf16.msra.mxu0 0
        %1384 = vmatprep.subr.bf16.mxu0 0
        %1385 = vmatpush2.bf16.msra.mxu0 0
        %1386 = vmatprep.subr.bf16.mxu0 0
        %1387 = vmatpush2.bf16.msra.mxu0 0
        %1388 = vmatprep.subr.bf16.mxu0 0
        %1389 = vmatpush2.bf16.msra.mxu0 0
        %1390 = vmatprep.subr.bf16.mxu0 0
        %1391 = vmatpush2.bf16.msra.mxu0 0
        %1392 = vmatprep.subr.bf16.mxu0 0
        %1393 = vmatpush2.bf16.msra.mxu0 0
        %1394 = vmatprep.mubr.bf16.mxu0 0
        %1395 = vmatmul.mubr.bf16.gmra.mxu0 %v1357
        %v1396 = vpop.f32.mrf.mxu0
        %v1397 = vadd.f32 0.0, %v1396
        %v1398 = vpop.f32.mrf.mxu0
        %v1399 = vpop.f32.mrf.mxu0
        %v1400 = vpop.f32.mrf.mxu0
        %1401 = vdwg.mxu0
        %1402 = vrot.lane.b32.xlu0 %v960, 64
        %v1403 = vpop.permute.xlu0 %1402
        %1404 = vrot.lane.b32.xlu0 %v962, 64
        %v1405 = vpop.permute.xlu0 %1404
        %v1407 = vsel %vm879, %v1403, 0
        %v1410 = vsel %vm879, %v1405, 0
        %1412 = vmatprep.subr.bf16.mxu0 0
        %1413 = vmatpush1.bf16.xpose.msra.mxu0 0
        %1414 = vmatprep.subr.bf16.mxu0 0
        %1415 = vmatpush1.bf16.xpose.msra.mxu0 0
        %1416 = vmatprep.subr.bf16.mxu0 0
        %1417 = vmatpush1.bf16.xpose.msra.mxu0 0
        %1418 = vmatprep.subr.bf16.mxu0 0
        %1419 = vmatpush1.bf16.xpose.msra.mxu0 0
        %1420 = vmatprep.subr.bf16.mxu0 0
        %1421 = vmatpush1.bf16.xpose.msra.mxu0 0
        %1422 = vmatprep.subr.bf16.mxu0 0
        %1423 = vmatpush1.bf16.xpose.msra.mxu0 0
        %1424 = vmatprep.subr.bf16.mxu0 0
        %1425 = vmatpush1.bf16.xpose.msra.mxu0 0
        %1426 = vmatprep.subr.bf16.mxu0 0
        %1427 = vmatpush1.bf16.xpose.msra.mxu0 %v1410
        %1428 = vmatprep.subr.bf16.mxu0 0
        %1429 = vmatpush2.bf16.xpose.msra.mxu0 0
        %1430 = vmatprep.subr.bf16.mxu0 0
        %1431 = vmatpush2.bf16.xpose.msra.mxu0 0
        %1432 = vmatprep.subr.bf16.mxu0 0
        %1433 = vmatpush2.bf16.xpose.msra.mxu0 0
        %1434 = vmatprep.subr.bf16.mxu0 0
        %1435 = vmatpush2.bf16.xpose.msra.mxu0 0
        %1436 = vmatprep.subr.bf16.mxu0 0
        %1437 = vmatpush2.bf16.xpose.msra.mxu0 0
        %1438 = vmatprep.subr.bf16.mxu0 0
        %1439 = vmatpush2.bf16.xpose.msra.mxu0 0
        %1440 = vmatprep.subr.bf16.mxu0 0
        %1441 = vmatpush2.bf16.xpose.msra.mxu0 0
        %1442 = vmatprep.subr.bf16.mxu0 0
        %1443 = vmatpush2.bf16.xpose.msra.mxu0 0
        %1444 = vmatprep.mubr.bf16.mxu0 0
        %1445 = vmatmul.mubr.bf16.gmra.mxu0 %v1407
        %v1446 = vpop.f32.mrf.mxu0
        %v1447 = vadd.f32 0.0, %v1446
        %v1448 = vpop.f32.mrf.mxu0
        %v1449 = vpop.f32.mrf.mxu0
        %v1450 = vpop.f32.mrf.mxu0
        %1451 = vdwg.mxu0
        %1452 = vrot.lane.b32.xlu0 %v961, 64
        %v1453 = vpop.permute.xlu0 %1452
        %1454 = vrot.lane.b32.xlu0 %v963, 64
        %v1455 = vpop.permute.xlu0 %1454
        %v1457 = vsel %vm879, %v1453, 0
        %v1460 = vsel %vm879, %v1455, 0
        %1462 = vmatprep.subr.bf16.mxu0 0
        %1463 = vmatpush1.bf16.xpose.msra.mxu0 0
        %1464 = vmatprep.subr.bf16.mxu0 0
        %1465 = vmatpush1.bf16.xpose.msra.mxu0 0
        %1466 = vmatprep.subr.bf16.mxu0 0
        %1467 = vmatpush1.bf16.xpose.msra.mxu0 0
        %1468 = vmatprep.subr.bf16.mxu0 0
        %1469 = vmatpush1.bf16.xpose.msra.mxu0 0
        %1470 = vmatprep.subr.bf16.mxu0 0
        %1471 = vmatpush1.bf16.xpose.msra.mxu0 0
        %1472 = vmatprep.subr.bf16.mxu0 0
        %1473 = vmatpush1.bf16.xpose.msra.mxu0 0
        %1474 = vmatprep.subr.bf16.mxu0 0
        %1475 = vmatpush1.bf16.xpose.msra.mxu0 0
        %1476 = vmatprep.subr.bf16.mxu0 0
        %1477 = vmatpush1.bf16.xpose.msra.mxu0 %v1460
        %1478 = vmatprep.subr.bf16.mxu0 0
        %1479 = vmatpush2.bf16.xpose.msra.mxu0 0
        %1480 = vmatprep.subr.bf16.mxu0 0
        %1481 = vmatpush2.bf16.xpose.msra.mxu0 0
        %1482 = vmatprep.subr.bf16.mxu0 0
        %1483 = vmatpush2.bf16.xpose.msra.mxu0 0
        %1484 = vmatprep.subr.bf16.mxu0 0
        %1485 = vmatpush2.bf16.xpose.msra.mxu0 0
        %1486 = vmatprep.subr.bf16.mxu0 0
        %1487 = vmatpush2.bf16.xpose.msra.mxu0 0
        %1488 = vmatprep.subr.bf16.mxu0 0
        %1489 = vmatpush2.bf16.xpose.msra.mxu0 0
        %1490 = vmatprep.subr.bf16.mxu0 0
        %1491 = vmatpush2.bf16.xpose.msra.mxu0 0
        %1492 = vmatprep.subr.bf16.mxu0 0
        %1493 = vmatpush2.bf16.xpose.msra.mxu0 0
        %1494 = vmatprep.mubr.bf16.mxu0 0
        %1495 = vmatmul.mubr.bf16.gmra.mxu0 %v1457
        %v1496 = vpop.f32.mrf.mxu0
        %v1497 = vadd.f32 0.0, %v1496
        %v1498 = vpop.f32.mrf.mxu0
        %v1499 = vpop.f32.mrf.mxu0
        %v1500 = vpop.f32.mrf.mxu0
        %1501 = vdwg.mxu0
        %v1502 = vsel %vm1058, %v1447, -inf
        %1503 = vmax.xlane.f32.xlu0 %v1502
        %v1504 = vpop.xlane.xlu0 %1503
        %v1505 = vsel %vm1058, %v1497, -inf
        %1506 = vmax.xlane.f32.xlu0 %v1505
        %v1507 = vpop.xlane.xlu0 %1506
        %v1508 = vsub.f32 %v1447, %v1504
        %v1509 = vsub.f32 %v1497, %v1507
        %v1510 = vmul.f32 %v1508, 1.442695
        %v1511 = vpow.pop %v1510
        %v1512 = vmul.f32 %v1509, 1.442695
        %v1513 = vpow.pop %v1512
        %v1514 = vsel %vm1058, %v1511, 0.0
        %1515 = vadd.xlane.f32.xlu0 %v1514
        %v1516 = vpop.xlane.xlu0 %1515
        %v1517 = vsel %vm1058, %v1513, 0.0
        %1518 = vadd.xlane.f32.xlu0 %v1517
        %v1519 = vpop.xlane.xlu0 %1518
        %v1520 = vrcp.pop %v1516
        %v1521 = vrcp.pop %v1519
        %v1522 = vmul.f32 %v1511, %v1520
        %v1523 = vmul.f32 %v1513, %v1521
        %v1524 = vpack.c.bf16 %v1522, %v1522
        %v1525 = vpack.c.bf16 %v1523, %v1523
        %1526 = vrot.lane.b32.xlu0 %v964, 64
        %v1527 = vpop.permute.xlu0 %1526
        %v1529 = vsel %vm1058, %v1524, 0
        %v1532 = vsel %vm1086, %v1527, 0
        %1534 = vmatprep.subr.bf16.mxu0 0
        %1535 = vmatpush1.bf16.msra.mxu0 0
        %1536 = vmatprep.subr.bf16.mxu0 0
        %1537 = vmatpush1.bf16.msra.mxu0 0
        %1538 = vmatprep.subr.bf16.mxu0 0
        %1539 = vmatpush1.bf16.msra.mxu0 0
        %1540 = vmatprep.subr.bf16.mxu0 0
        %1541 = vmatpush1.bf16.msra.mxu0 0
        %1542 = vmatprep.subr.bf16.mxu0 0
        %1543 = vmatpush1.bf16.msra.mxu0 0
        %1544 = vmatprep.subr.bf16.mxu0 0
        %1545 = vmatpush1.bf16.msra.mxu0 0
        %1546 = vmatprep.subr.bf16.mxu0 0
        %1547 = vmatpush1.bf16.msra.mxu0 0
        %1548 = vmatprep.subr.bf16.mxu0 0
        %1549 = vmatpush1.bf16.msra.mxu0 %v1532
        %1550 = vmatprep.subr.bf16.mxu0 0
        %1551 = vmatpush2.bf16.msra.mxu0 0
        %1552 = vmatprep.subr.bf16.mxu0 0
        %1553 = vmatpush2.bf16.msra.mxu0 0
        %1554 = vmatprep.subr.bf16.mxu0 0
        %1555 = vmatpush2.bf16.msra.mxu0 0
        %1556 = vmatprep.subr.bf16.mxu0 0
        %1557 = vmatpush2.bf16.msra.mxu0 0
        %1558 = vmatprep.subr.bf16.mxu0 0
        %1559 = vmatpush2.bf16.msra.mxu0 0
        %1560 = vmatprep.subr.bf16.mxu0 0
        %1561 = vmatpush2.bf16.msra.mxu0 0
        %1562 = vmatprep.subr.bf16.mxu0 0
        %1563 = vmatpush2.bf16.msra.mxu0 0
        %1564 = vmatprep.subr.bf16.mxu0 0
        %1565 = vmatpush2.bf16.msra.mxu0 0
        %1566 = vmatprep.mubr.bf16.mxu0 0
        %1567 = vmatmul.mubr.bf16.gmra.mxu0 %v1529
        %v1568 = vpop.f32.mrf.mxu0
        %v1569 = vadd.f32 0.0, %v1568
        %v1570 = vpop.f32.mrf.mxu0
        %v1571 = vpop.f32.mrf.mxu0
        %v1572 = vpop.f32.mrf.mxu0
        %1573 = vdwg.mxu0
        %1574 = vrot.lane.b32.xlu0 %v965, 64
        %v1575 = vpop.permute.xlu0 %1574
        %v1577 = vsel %vm1058, %v1525, 0
        %v1580 = vsel %vm1086, %v1575, 0
        %1582 = vmatprep.subr.bf16.mxu0 0
        %1583 = vmatpush1.bf16.msra.mxu0 0
        %1584 = vmatprep.subr.bf16.mxu0 0
        %1585 = vmatpush1.bf16.msra.mxu0 0
        %1586 = vmatprep.subr.bf16.mxu0 0
        %1587 = vmatpush1.bf16.msra.mxu0 0
        %1588 = vmatprep.subr.bf16.mxu0 0
        %1589 = vmatpush1.bf16.msra.mxu0 0
        %1590 = vmatprep.subr.bf16.mxu0 0
        %1591 = vmatpush1.bf16.msra.mxu0 0
        %1592 = vmatprep.subr.bf16.mxu0 0
        %1593 = vmatpush1.bf16.msra.mxu0 0
        %1594 = vmatprep.subr.bf16.mxu0 0
        %1595 = vmatpush1.bf16.msra.mxu0 0
        %1596 = vmatprep.subr.bf16.mxu0 0
        %1597 = vmatpush1.bf16.msra.mxu0 %v1580
        %1598 = vmatprep.subr.bf16.mxu0 0
        %1599 = vmatpush2.bf16.msra.mxu0 0
        %1600 = vmatprep.subr.bf16.mxu0 0
        %1601 = vmatpush2.bf16.msra.mxu0 0
        %1602 = vmatprep.subr.bf16.mxu0 0
        %1603 = vmatpush2.bf16.msra.mxu0 0
        %1604 = vmatprep.subr.bf16.mxu0 0
        %1605 = vmatpush2.bf16.msra.mxu0 0
        %1606 = vmatprep.subr.bf16.mxu0 0
        %1607 = vmatpush2.bf16.msra.mxu0 0
        %1608 = vmatprep.subr.bf16.mxu0 0
        %1609 = vmatpush2.bf16.msra.mxu0 0
        %1610 = vmatprep.subr.bf16.mxu0 0
        %1611 = vmatpush2.bf16.msra.mxu0 0
        %1612 = vmatprep.subr.bf16.mxu0 0
        %1613 = vmatpush2.bf16.msra.mxu0 0
        %1614 = vmatprep.mubr.bf16.mxu0 0
        %1615 = vmatmul.mubr.bf16.gmra.mxu0 %v1577
        %v1616 = vpop.f32.mrf.mxu0
        %v1617 = vadd.f32 0.0, %v1616
        %v1618 = vpop.f32.mrf.mxu0
        %v1619 = vpop.f32.mrf.mxu0
        %v1620 = vpop.f32.mrf.mxu0
        %1621 = vdwg.mxu0
        %1622 = vrot.lane.b32.xlu0 %v960, 32
        %v1623 = vpop.permute.xlu0 %1622
        %1624 = vrot.lane.b32.xlu0 %v962, 32
        %v1625 = vpop.permute.xlu0 %1624
        %v1627 = vsel %vm879, %v1623, 0
        %v1630 = vsel %vm879, %v1625, 0
        %1632 = vmatprep.subr.bf16.mxu0 0
        %1633 = vmatpush1.bf16.xpose.msra.mxu0 0
        %1634 = vmatprep.subr.bf16.mxu0 0
        %1635 = vmatpush1.bf16.xpose.msra.mxu0 0
        %1636 = vmatprep.subr.bf16.mxu0 0
        %1637 = vmatpush1.bf16.xpose.msra.mxu0 0
        %1638 = vmatprep.subr.bf16.mxu0 0
        %1639 = vmatpush1.bf16.xpose.msra.mxu0 0
        %1640 = vmatprep.subr.bf16.mxu0 0
        %1641 = vmatpush1.bf16.xpose.msra.mxu0 0
        %1642 = vmatprep.subr.bf16.mxu0 0
        %1643 = vmatpush1.bf16.xpose.msra.mxu0 0
        %1644 = vmatprep.subr.bf16.mxu0 0
        %1645 = vmatpush1.bf16.xpose.msra.mxu0 0
        %1646 = vmatprep.subr.bf16.mxu0 0
        %1647 = vmatpush1.bf16.xpose.msra.mxu0 %v1630
        %1648 = vmatprep.subr.bf16.mxu0 0
        %1649 = vmatpush2.bf16.xpose.msra.mxu0 0
        %1650 = vmatprep.subr.bf16.mxu0 0
        %1651 = vmatpush2.bf16.xpose.msra.mxu0 0
        %1652 = vmatprep.subr.bf16.mxu0 0
        %1653 = vmatpush2.bf16.xpose.msra.mxu0 0
        %1654 = vmatprep.subr.bf16.mxu0 0
        %1655 = vmatpush2.bf16.xpose.msra.mxu0 0
        %1656 = vmatprep.subr.bf16.mxu0 0
        %1657 = vmatpush2.bf16.xpose.msra.mxu0 0
        %1658 = vmatprep.subr.bf16.mxu0 0
        %1659 = vmatpush2.bf16.xpose.msra.mxu0 0
        %1660 = vmatprep.subr.bf16.mxu0 0
        %1661 = vmatpush2.bf16.xpose.msra.mxu0 0
        %1662 = vmatprep.subr.bf16.mxu0 0
        %1663 = vmatpush2.bf16.xpose.msra.mxu0 0
        %1664 = vmatprep.mubr.bf16.mxu0 0
        %1665 = vmatmul.mubr.bf16.gmra.mxu0 %v1627
        %v1666 = vpop.f32.mrf.mxu0
        %v1667 = vadd.f32 0.0, %v1666
        %v1668 = vpop.f32.mrf.mxu0
        %v1669 = vpop.f32.mrf.mxu0
        %v1670 = vpop.f32.mrf.mxu0
        %1671 = vdwg.mxu0
        %1672 = vrot.lane.b32.xlu0 %v961, 32
        %v1673 = vpop.permute.xlu0 %1672
        %1674 = vrot.lane.b32.xlu0 %v963, 32
        %v1675 = vpop.permute.xlu0 %1674
        %v1677 = vsel %vm879, %v1673, 0
        %v1680 = vsel %vm879, %v1675, 0
        %1682 = vmatprep.subr.bf16.mxu0 0
        %1683 = vmatpush1.bf16.xpose.msra.mxu0 0
        %1684 = vmatprep.subr.bf16.mxu0 0
        %1685 = vmatpush1.bf16.xpose.msra.mxu0 0
        %1686 = vmatprep.subr.bf16.mxu0 0
        %1687 = vmatpush1.bf16.xpose.msra.mxu0 0
        %1688 = vmatprep.subr.bf16.mxu0 0
        %1689 = vmatpush1.bf16.xpose.msra.mxu0 0
        %1690 = vmatprep.subr.bf16.mxu0 0
        %1691 = vmatpush1.bf16.xpose.msra.mxu0 0
        %1692 = vmatprep.subr.bf16.mxu0 0
        %1693 = vmatpush1.bf16.xpose.msra.mxu0 0
        %1694 = vmatprep.subr.bf16.mxu0 0
        %1695 = vmatpush1.bf16.xpose.msra.mxu0 0
        %1696 = vmatprep.subr.bf16.mxu0 0
        %1697 = vmatpush1.bf16.xpose.msra.mxu0 %v1680
        %1698 = vmatprep.subr.bf16.mxu0 0
        %1699 = vmatpush2.bf16.xpose.msra.mxu0 0
        %1700 = vmatprep.subr.bf16.mxu0 0
        %1701 = vmatpush2.bf16.xpose.msra.mxu0 0
        %1702 = vmatprep.subr.bf16.mxu0 0
        %1703 = vmatpush2.bf16.xpose.msra.mxu0 0
        %1704 = vmatprep.subr.bf16.mxu0 0
        %1705 = vmatpush2.bf16.xpose.msra.mxu0 0
        %1706 = vmatprep.subr.bf16.mxu0 0
        %1707 = vmatpush2.bf16.xpose.msra.mxu0 0
        %1708 = vmatprep.subr.bf16.mxu0 0
        %1709 = vmatpush2.bf16.xpose.msra.mxu0 0
        %1710 = vmatprep.subr.bf16.mxu0 0
        %1711 = vmatpush2.bf16.xpose.msra.mxu0 0
        %1712 = vmatprep.subr.bf16.mxu0 0
        %1713 = vmatpush2.bf16.xpose.msra.mxu0 0
        %1714 = vmatprep.mubr.bf16.mxu0 0
        %1715 = vmatmul.mubr.bf16.gmra.mxu0 %v1677
        %v1716 = vpop.f32.mrf.mxu0
        %v1717 = vadd.f32 0.0, %v1716
        %v1718 = vpop.f32.mrf.mxu0
        %v1719 = vpop.f32.mrf.mxu0
        %v1720 = vpop.f32.mrf.mxu0
        %1721 = vdwg.mxu0
        %v1722 = vsel %vm1058, %v1667, -inf
        %1723 = vmax.xlane.f32.xlu0 %v1722
        %v1724 = vpop.xlane.xlu0 %1723
        %v1725 = vsel %vm1058, %v1717, -inf
        %1726 = vmax.xlane.f32.xlu0 %v1725
        %v1727 = vpop.xlane.xlu0 %1726
        %v1728 = vsub.f32 %v1667, %v1724
        %v1729 = vsub.f32 %v1717, %v1727
        %v1730 = vmul.f32 %v1728, 1.442695
        %v1731 = vpow.pop %v1730
        %v1732 = vmul.f32 %v1729, 1.442695
        %v1733 = vpow.pop %v1732
        %v1734 = vsel %vm1058, %v1731, 0.0
        %1735 = vadd.xlane.f32.xlu0 %v1734
        %v1736 = vpop.xlane.xlu0 %1735
        %v1737 = vsel %vm1058, %v1733, 0.0
        %1738 = vadd.xlane.f32.xlu0 %v1737
        %v1739 = vpop.xlane.xlu0 %1738
        %v1740 = vrcp.pop %v1736
        %v1741 = vrcp.pop %v1739
        %v1742 = vmul.f32 %v1731, %v1740
        %v1743 = vmul.f32 %v1733, %v1741
        %v1744 = vpack.c.bf16 %v1742, %v1742
        %v1745 = vpack.c.bf16 %v1743, %v1743
        %1746 = vrot.lane.b32.xlu0 %v964, 32
        %v1747 = vpop.permute.xlu0 %1746
        %v1749 = vsel %vm1058, %v1744, 0
        %v1752 = vsel %vm1086, %v1747, 0
        %1754 = vmatprep.subr.bf16.mxu0 0
        %1755 = vmatpush1.bf16.msra.mxu0 0
        %1756 = vmatprep.subr.bf16.mxu0 0
        %1757 = vmatpush1.bf16.msra.mxu0 0
        %1758 = vmatprep.subr.bf16.mxu0 0
        %1759 = vmatpush1.bf16.msra.mxu0 0
        %1760 = vmatprep.subr.bf16.mxu0 0
        %1761 = vmatpush1.bf16.msra.mxu0 0
        %1762 = vmatprep.subr.bf16.mxu0 0
        %1763 = vmatpush1.bf16.msra.mxu0 0
        %1764 = vmatprep.subr.bf16.mxu0 0
        %1765 = vmatpush1.bf16.msra.mxu0 0
        %1766 = vmatprep.subr.bf16.mxu0 0
        %1767 = vmatpush1.bf16.msra.mxu0 0
        %1768 = vmatprep.subr.bf16.mxu0 0
        %1769 = vmatpush1.bf16.msra.mxu0 %v1752
        %1770 = vmatprep.subr.bf16.mxu0 0
        %1771 = vmatpush2.bf16.msra.mxu0 0
        %1772 = vmatprep.subr.bf16.mxu0 0
        %1773 = vmatpush2.bf16.msra.mxu0 0
        %1774 = vmatprep.subr.bf16.mxu0 0
        %1775 = vmatpush2.bf16.msra.mxu0 0
        %1776 = vmatprep.subr.bf16.mxu0 0
        %1777 = vmatpush2.bf16.msra.mxu0 0
        %1778 = vmatprep.subr.bf16.mxu0 0
        %1779 = vmatpush2.bf16.msra.mxu0 0
        %1780 = vmatprep.subr.bf16.mxu0 0
        %1781 = vmatpush2.bf16.msra.mxu0 0
        %1782 = vmatprep.subr.bf16.mxu0 0
        %1783 = vmatpush2.bf16.msra.mxu0 0
        %1784 = vmatprep.subr.bf16.mxu0 0
        %1785 = vmatpush2.bf16.msra.mxu0 0
        %1786 = vmatprep.mubr.bf16.mxu0 0
        %1787 = vmatmul.mubr.bf16.gmra.mxu0 %v1749
        %v1788 = vpop.f32.mrf.mxu0
        %v1789 = vadd.f32 0.0, %v1788
        %v1790 = vpop.f32.mrf.mxu0
        %v1791 = vpop.f32.mrf.mxu0
        %v1792 = vpop.f32.mrf.mxu0
        %1793 = vdwg.mxu0
        %1794 = vrot.lane.b32.xlu0 %v965, 32
        %v1795 = vpop.permute.xlu0 %1794
        %v1797 = vsel %vm1058, %v1745, 0
        %v1800 = vsel %vm1086, %v1795, 0
        %1802 = vmatprep.subr.bf16.mxu0 0
        %1803 = vmatpush1.bf16.msra.mxu0 0
        %1804 = vmatprep.subr.bf16.mxu0 0
        %1805 = vmatpush1.bf16.msra.mxu0 0
        %1806 = vmatprep.subr.bf16.mxu0 0
        %1807 = vmatpush1.bf16.msra.mxu0 0
        %1808 = vmatprep.subr.bf16.mxu0 0
        %1809 = vmatpush1.bf16.msra.mxu0 0
        %1810 = vmatprep.subr.bf16.mxu0 0
        %1811 = vmatpush1.bf16.msra.mxu0 0
        %1812 = vmatprep.subr.bf16.mxu0 0
        %1813 = vmatpush1.bf16.msra.mxu0 0
        %1814 = vmatprep.subr.bf16.mxu0 0
        %1815 = vmatpush1.bf16.msra.mxu0 0
        %1816 = vmatprep.subr.bf16.mxu0 0
        %1817 = vmatpush1.bf16.msra.mxu0 %v1800
        %1818 = vmatprep.subr.bf16.mxu0 0
        %1819 = vmatpush2.bf16.msra.mxu0 0
        %1820 = vmatprep.subr.bf16.mxu0 0
        %1821 = vmatpush2.bf16.msra.mxu0 0
        %1822 = vmatprep.subr.bf16.mxu0 0
        %1823 = vmatpush2.bf16.msra.mxu0 0
        %1824 = vmatprep.subr.bf16.mxu0 0
        %1825 = vmatpush2.bf16.msra.mxu0 0
        %1826 = vmatprep.subr.bf16.mxu0 0
        %1827 = vmatpush2.bf16.msra.mxu0 0
        %1828 = vmatprep.subr.bf16.mxu0 0
        %1829 = vmatpush2.bf16.msra.mxu0 0
        %1830 = vmatprep.subr.bf16.mxu0 0
        %1831 = vmatpush2.bf16.msra.mxu0 0
        %1832 = vmatprep.subr.bf16.mxu0 0
        %1833 = vmatpush2.bf16.msra.mxu0 0
        %1834 = vmatprep.mubr.bf16.mxu0 0
        %1835 = vmatmul.mubr.bf16.gmra.mxu0 %v1797
        %v1836 = vpop.f32.mrf.mxu0
        %v1837 = vadd.f32 0.0, %v1836
        %v1838 = vpop.f32.mrf.mxu0
        %v1839 = vpop.f32.mrf.mxu0
        %v1840 = vpop.f32.mrf.mxu0
        %1841 = vdwg.mxu0
        %1844 = vrot.lane.b32.xlu0 %v1348, 32
        %v1845 = vpop.permute.xlu0 %1844
        %1846 = vrot.lane.b32.xlu0 %v1397, 32
        %v1847 = vpop.permute.xlu0 %1846
        %1852 = vrot.lane.b32.xlu0 %v1569, 64
        %v1853 = vpop.permute.xlu0 %1852
        %1854 = vrot.lane.b32.xlu0 %v1617, 64
        %v1855 = vpop.permute.xlu0 %1854
        %1860 = vrot.lane.b32.xlu0 %v1789, 96
        %v1861 = vpop.permute.xlu0 %1860
        %1862 = vrot.lane.b32.xlu0 %v1837, 96
        %v1863 = vpop.permute.xlu0 %1862
        %v1866 = vsel %vm879, %v1125, %v1845
        %v1867 = vsel %vm879, %v1171, %v1847
        %vm1868 = vcmask 523264
        %v1869 = vsel %vm1868, %v1866, %v1853
        %v1870 = vsel %vm1868, %v1867, %v1855
        %vm1871 = vcmask 785408
        %v1872 = vsel %vm1871, %v1869, %v1861
        %v1873 = vsel %vm1871, %v1870, %v1863
        %v1874 = vpack.c.bf16 %v1873, %v1872
        %v1875 = vld [vmem:[%s472] sm:$0xf]
        %v1876 = vld [vmem:[%s472 + $0x4] sm:$0xf]
        %v1877 = vld [vmem:[%s472 + $0x8] sm:$0xf]
        %v1878 = vld [vmem:[%s472 + $0xc] sm:$0xf]
        %v1879 = vld [vmem:[%s472 + $0x10] sm:$0xf]
        %v1880 = vld [vmem:[%s472 + $0x14] sm:$0xf]
        %v1881 = vld [vmem:[%s472 + $0x18] sm:$0xf]
        %v1882 = vld [vmem:[%s472 + $0x1c] sm:$0xf]
        %v1883 = vld [vmem:[%s472 + $0x20] sm:$0xf]
        %v1884 = vld [vmem:[%s472 + $0x24] sm:$0xf]
        %v1885 = vld [vmem:[%s472 + $0x28] sm:$0xf]
        %v1886 = vld [vmem:[%s472 + $0x2c] sm:$0xf]
        %v1887 = vld [vmem:[%s472 + $0x30] sm:$0xf]
        %v1888 = vld [vmem:[%s472 + $0x34] sm:$0xf]
        %v1889 = vld [vmem:[%s472 + $0x38] sm:$0xf]
        %v1890 = vld [vmem:[%s472 + $0x3c] sm:$0xf]
        %v1907 = vunpack.c.l.b16 %v1875
        %v1908 = vunpack.c.l.b16 %v1876
        %v1909 = vunpack.c.l.b16 %v1877
        %v1910 = vunpack.c.l.b16 %v1878
        %v1911 = vunpack.c.l.b16 %v1879
        %v1912 = vunpack.c.l.b16 %v1880
        %v1913 = vunpack.c.l.b16 %v1881
        %v1914 = vunpack.c.l.b16 %v1882
        %v1915 = vunpack.c.l.b16 %v1883
        %v1916 = vunpack.c.l.b16 %v1884
        %v1917 = vunpack.c.l.b16 %v1885
        %v1918 = vunpack.c.l.b16 %v1886
        %v1919 = vunpack.c.l.b16 %v1887
        %v1920 = vunpack.c.l.b16 %v1888
        %v1921 = vunpack.c.l.b16 %v1889
        %v1922 = vunpack.c.l.b16 %v1890
        %v1923 = vpack.c.b16 %v1908, %v1907
        %v1924 = vpack.c.b16 %v1910, %v1909
        %v1925 = vpack.c.b16 %v1912, %v1911
        %v1926 = vpack.c.b16 %v1914, %v1913
        %v1927 = vpack.c.b16 %v1916, %v1915
        %v1928 = vpack.c.b16 %v1918, %v1917
        %v1929 = vpack.c.b16 %v1920, %v1919
        %v1930 = vpack.c.b16 %v1922, %v1921
        %1939 = vmatprep.subr.bf16.mxu0 0
        %1940 = vmatpush1.bf16.msra.mxu0 %v1930
        %1941 = vmatprep.subr.bf16.mxu0 0
        %1942 = vmatpush1.bf16.msra.mxu0 %v1929
        %1943 = vmatprep.subr.bf16.mxu0 0
        %1944 = vmatpush1.bf16.msra.mxu0 %v1928
        %1945 = vmatprep.subr.bf16.mxu0 0
        %1946 = vmatpush1.bf16.msra.mxu0 %v1927
        %1947 = vmatprep.subr.bf16.mxu0 0
        %1948 = vmatpush1.bf16.msra.mxu0 %v1926
        %1949 = vmatprep.subr.bf16.mxu0 0
        %1950 = vmatpush1.bf16.msra.mxu0 %v1925
        %1951 = vmatprep.subr.bf16.mxu0 0
        %1952 = vmatpush1.bf16.msra.mxu0 %v1924
        %1953 = vmatprep.subr.bf16.mxu0 0
        %1954 = vmatpush1.bf16.msra.mxu0 %v1923
        %1955 = vmatprep.subr.bf16.mxu0 0
        %1956 = vmatpush2.bf16.msra.mxu0 0
        %1957 = vmatprep.subr.bf16.mxu0 0
        %1958 = vmatpush2.bf16.msra.mxu0 0
        %1959 = vmatprep.subr.bf16.mxu0 0
        %1960 = vmatpush2.bf16.msra.mxu0 0
        %1961 = vmatprep.subr.bf16.mxu0 0
        %1962 = vmatpush2.bf16.msra.mxu0 0
        %1963 = vmatprep.subr.bf16.mxu0 0
        %1964 = vmatpush2.bf16.msra.mxu0 0
        %1965 = vmatprep.subr.bf16.mxu0 0
        %1966 = vmatpush2.bf16.msra.mxu0 0
        %1967 = vmatprep.subr.bf16.mxu0 0
        %1968 = vmatpush2.bf16.msra.mxu0 0
        %1969 = vmatprep.subr.bf16.mxu0 0
        %1970 = vmatpush2.bf16.msra.mxu0 0
        %1971 = vmatprep.mubr.bf16.mxu0 0
        %1972 = vmatmul.mubr.bf16.gmra.mxu0 %v1874
        %v1973 = vpop.f32.mrf.mxu0
        %v1974 = vadd.f32 0.0, %v1973
        %v1975 = vpop.f32.mrf.mxu0
        %v1976 = vpop.f32.mrf.mxu0
        %v1977 = vadd.f32 0.0, %v1976
        %v1978 = vpop.f32.mrf.mxu0
        %1979 = vdwg.mxu0
        %v1980 = vadd.f32 %v579, %v1974
        %v1981 = vadd.f32 %v580, %v1977
        %v1982 = vlaneseq
        %v1983 = vshrl.u32 %v1982, 7
        %v1984 = vsub.s32 2, %v1983
        %v1985 = vrot.slane %v578, %v1984
        %v1986 = vadd.f32 %v1980, %v1985
        %v1987 = vadd.f32 %v1981, %v1985
        %1988 = vadd.xlane.f32.xlu0 %v1986
        %v1989 = vpop.xlane.xlu0 %1988
        %1990 = vadd.xlane.f32.xlu0 %v1987
        %v1991 = vpop.xlane.xlu0 %1990
        %v1992 = vmul.f32 %v1989, %v585
        %v1993 = vmul.f32 %v1991, %v585
        %v1994 = vsub.f32 %v1986, %v1992
        %v1995 = vsub.f32 %v1987, %v1993
        %v1996 = vmul.f32 %v1994, %v1994
        %v1997 = vmul.f32 %v1995, %v1995
        %1998 = vadd.xlane.f32.xlu0 %v1996
        %v1999 = vpop.xlane.xlu0 %1998
        %2000 = vadd.xlane.f32.xlu0 %v1997
        %v2001 = vpop.xlane.xlu0 %2000
        %v2002 = vmul.f32 %v1999, %v585
        %v2003 = vmul.f32 %v2001, %v585
        %v2004 = vadd.f32 %v2002, 1e-05
        %v2005 = vadd.f32 %v2003, 1e-05
        %v2006 = vrsqrt.pop %v2004
        %v2007 = vrsqrt.pop %v2005
        %v2008 = vmul.f32 %v1994, %v2006
        %v2009 = vmul.f32 %v1995, %v2007
        %v2010 = vlaneseq
        %v2011 = vshrl.u32 %v2010, 7
        %v2012 = vsub.s32 3, %v2011
        %v2013 = vrot.slane %v578, %v2012
        %v2014 = vmul.f32 %v2008, %v2013
        %v2015 = vmul.f32 %v2009, %v2013
        %v2016 = vlaneseq
        %v2017 = vshrl.u32 %v2016, 7
        %v2018 = vsub.s32 4, %v2017
        %v2019 = vrot.slane %v578, %v2018
        %v2020 = vadd.f32 %v2014, %v2019
        %v2021 = vadd.f32 %v2015, %v2019
        %v2022 = vpack.c.bf16 %v2021, %v2020
        %v2023 = vld [vmem:[%s481] sm:$0xf]
        %v2024 = vld [vmem:[%s481 + $0x4] sm:$0xf]
        %v2025 = vld [vmem:[%s481 + $0x8] sm:$0xf]
        %v2026 = vld [vmem:[%s481 + $0xc] sm:$0xf]
        %v2027 = vld [vmem:[%s481 + $0x10] sm:$0xf]
        %v2028 = vld [vmem:[%s481 + $0x14] sm:$0xf]
        %v2029 = vld [vmem:[%s481 + $0x18] sm:$0xf]
        %v2030 = vld [vmem:[%s481 + $0x1c] sm:$0xf]
        %v2031 = vld [vmem:[%s481 + $0x20] sm:$0xf]
        %v2032 = vld [vmem:[%s481 + $0x24] sm:$0xf]
        %v2033 = vld [vmem:[%s481 + $0x28] sm:$0xf]
        %v2034 = vld [vmem:[%s481 + $0x2c] sm:$0xf]
        %v2035 = vld [vmem:[%s481 + $0x30] sm:$0xf]
        %v2036 = vld [vmem:[%s481 + $0x34] sm:$0xf]
        %v2037 = vld [vmem:[%s481 + $0x38] sm:$0xf]
        %v2038 = vld [vmem:[%s481 + $0x3c] sm:$0xf]
        %v2039 = vlaneseq
        %v2040 = vshrl.u32 %v2039, 7
        %v2041 = vsub.s32 5, %v2040
        %v2042 = vrot.slane %v578, %v2041
        %v2059 = vunpack.c.l.b16 %v2023
        %v2060 = vunpack.c.l.b16 %v2024
        %v2061 = vunpack.c.l.b16 %v2025
        %v2062 = vunpack.c.l.b16 %v2026
        %v2063 = vunpack.c.l.b16 %v2027
        %v2064 = vunpack.c.l.b16 %v2028
        %v2065 = vunpack.c.l.b16 %v2029
        %v2066 = vunpack.c.l.b16 %v2030
        %v2067 = vunpack.c.l.b16 %v2031
        %v2068 = vunpack.c.l.b16 %v2032
        %v2069 = vunpack.c.l.b16 %v2033
        %v2070 = vunpack.c.l.b16 %v2034
        %v2071 = vunpack.c.l.b16 %v2035
        %v2072 = vunpack.c.l.b16 %v2036
        %v2073 = vunpack.c.l.b16 %v2037
        %v2074 = vunpack.c.l.b16 %v2038
        %v2075 = vpack.c.b16 %v2060, %v2059
        %v2076 = vpack.c.b16 %v2062, %v2061
        %v2077 = vpack.c.b16 %v2064, %v2063
        %v2078 = vpack.c.b16 %v2066, %v2065
        %v2079 = vpack.c.b16 %v2068, %v2067
        %v2080 = vpack.c.b16 %v2070, %v2069
        %v2081 = vpack.c.b16 %v2072, %v2071
        %v2082 = vpack.c.b16 %v2074, %v2073
        %2091 = vmatprep.subr.bf16.mxu0 0
        %2092 = vmatpush1.bf16.msra.mxu0 %v2082
        %2093 = vmatprep.subr.bf16.mxu0 0
        %2094 = vmatpush1.bf16.msra.mxu0 %v2081
        %2095 = vmatprep.subr.bf16.mxu0 0
        %2096 = vmatpush1.bf16.msra.mxu0 %v2080
        %2097 = vmatprep.subr.bf16.mxu0 0
        %2098 = vmatpush1.bf16.msra.mxu0 %v2079
        %2099 = vmatprep.subr.bf16.mxu0 0
        %2100 = vmatpush1.bf16.msra.mxu0 %v2078
        %2101 = vmatprep.subr.bf16.mxu0 0
        %2102 = vmatpush1.bf16.msra.mxu0 %v2077
        %2103 = vmatprep.subr.bf16.mxu0 0
        %2104 = vmatpush1.bf16.msra.mxu0 %v2076
        %2105 = vmatprep.subr.bf16.mxu0 0
        %2106 = vmatpush1.bf16.msra.mxu0 %v2075
        %2107 = vmatprep.subr.bf16.mxu0 0
        %2108 = vmatpush2.bf16.msra.mxu0 0
        %2109 = vmatprep.subr.bf16.mxu0 0
        %2110 = vmatpush2.bf16.msra.mxu0 0
        %2111 = vmatprep.subr.bf16.mxu0 0
        %2112 = vmatpush2.bf16.msra.mxu0 0
        %2113 = vmatprep.subr.bf16.mxu0 0
        %2114 = vmatpush2.bf16.msra.mxu0 0
        %2115 = vmatprep.subr.bf16.mxu0 0
        %2116 = vmatpush2.bf16.msra.mxu0 0
        %2117 = vmatprep.subr.bf16.mxu0 0
        %2118 = vmatpush2.bf16.msra.mxu0 0
        %2119 = vmatprep.subr.bf16.mxu0 0
        %2120 = vmatpush2.bf16.msra.mxu0 0
        %2121 = vmatprep.subr.bf16.mxu0 0
        %2122 = vmatpush2.bf16.msra.mxu0 0
        %2123 = vmatprep.mubr.bf16.mxu0 0
        %2124 = vmatmul.mubr.bf16.gmra.mxu0 %v2022
        %v2125 = vpop.f32.mrf.mxu0
        %v2126 = vadd.f32 %v2042, %v2125
        %v2127 = vpop.f32.mrf.mxu0
        %v2128 = vpop.f32.mrf.mxu0
        %v2129 = vadd.f32 %v2042, %v2128
        %v2130 = vpop.f32.mrf.mxu0
        %2131 = vdwg.mxu0
        %v2132 = vmul.f32 %v2126, 0.5
        %v2133 = vmul.f32 %v2129, 0.5
        %v2134 = vmul.f32 %v2126, 0.70710677
        %v2135 = vmul.f32 %v2129, 0.70710677
        %v2136 = verf.f32.pop %v2134
        %v2137 = verf.f32.pop %v2135
        %v2138 = vadd.f32 %v2136, 1.0
        %v2139 = vadd.f32 %v2137, 1.0
        %v2140 = vmul.f32 %v2132, %v2138
        %v2141 = vmul.f32 %v2133, %v2139
        %v2142 = vpack.c.bf16 %v2141, %v2140
        %v2143 = vld [vmem:[%s490] sm:$0xf]
        %v2144 = vld [vmem:[%s490 + $0x4] sm:$0xf]
        %v2145 = vld [vmem:[%s490 + $0x8] sm:$0xf]
        %v2146 = vld [vmem:[%s490 + $0xc] sm:$0xf]
        %v2147 = vld [vmem:[%s490 + $0x10] sm:$0xf]
        %v2148 = vld [vmem:[%s490 + $0x14] sm:$0xf]
        %v2149 = vld [vmem:[%s490 + $0x18] sm:$0xf]
        %v2150 = vld [vmem:[%s490 + $0x1c] sm:$0xf]
        %v2151 = vld [vmem:[%s490 + $0x20] sm:$0xf]
        %v2152 = vld [vmem:[%s490 + $0x24] sm:$0xf]
        %v2153 = vld [vmem:[%s490 + $0x28] sm:$0xf]
        %v2154 = vld [vmem:[%s490 + $0x2c] sm:$0xf]
        %v2155 = vld [vmem:[%s490 + $0x30] sm:$0xf]
        %v2156 = vld [vmem:[%s490 + $0x34] sm:$0xf]
        %v2157 = vld [vmem:[%s490 + $0x38] sm:$0xf]
        %v2158 = vld [vmem:[%s490 + $0x3c] sm:$0xf]
        %v2175 = vunpack.c.l.b16 %v2143
        %v2176 = vunpack.c.l.b16 %v2144
        %v2177 = vunpack.c.l.b16 %v2145
        %v2178 = vunpack.c.l.b16 %v2146
        %v2179 = vunpack.c.l.b16 %v2147
        %v2180 = vunpack.c.l.b16 %v2148
        %v2181 = vunpack.c.l.b16 %v2149
        %v2182 = vunpack.c.l.b16 %v2150
        %v2183 = vunpack.c.l.b16 %v2151
        %v2184 = vunpack.c.l.b16 %v2152
        %v2185 = vunpack.c.l.b16 %v2153
        %v2186 = vunpack.c.l.b16 %v2154
        %v2187 = vunpack.c.l.b16 %v2155
        %v2188 = vunpack.c.l.b16 %v2156
        %v2189 = vunpack.c.l.b16 %v2157
        %v2190 = vunpack.c.l.b16 %v2158
        %v2191 = vpack.c.b16 %v2176, %v2175
        %v2192 = vpack.c.b16 %v2178, %v2177
        %v2193 = vpack.c.b16 %v2180, %v2179
        %v2194 = vpack.c.b16 %v2182, %v2181
        %v2195 = vpack.c.b16 %v2184, %v2183
        %v2196 = vpack.c.b16 %v2186, %v2185
        %v2197 = vpack.c.b16 %v2188, %v2187
        %v2198 = vpack.c.b16 %v2190, %v2189
        %2207 = vmatprep.subr.bf16.mxu0 0
        %2208 = vmatpush1.bf16.msra.mxu0 %v2198
        %2209 = vmatprep.subr.bf16.mxu0 0
        %2210 = vmatpush1.bf16.msra.mxu0 %v2197
        %2211 = vmatprep.subr.bf16.mxu0 0
        %2212 = vmatpush1.bf16.msra.mxu0 %v2196
        %2213 = vmatprep.subr.bf16.mxu0 0
        %2214 = vmatpush1.bf16.msra.mxu0 %v2195
        %2215 = vmatprep.subr.bf16.mxu0 0
        %2216 = vmatpush1.bf16.msra.mxu0 %v2194
        %2217 = vmatprep.subr.bf16.mxu0 0
        %2218 = vmatpush1.bf16.msra.mxu0 %v2193
        %2219 = vmatprep.subr.bf16.mxu0 0
        %2220 = vmatpush1.bf16.msra.mxu0 %v2192
        %2221 = vmatprep.subr.bf16.mxu0 0
        %2222 = vmatpush1.bf16.msra.mxu0 %v2191
        %2223 = vmatprep.subr.bf16.mxu0 0
        %2224 = vmatpush2.bf16.msra.mxu0 0
        %2225 = vmatprep.subr.bf16.mxu0 0
        %2226 = vmatpush2.bf16.msra.mxu0 0
        %2227 = vmatprep.subr.bf16.mxu0 0
        %2228 = vmatpush2.bf16.msra.mxu0 0
        %2229 = vmatprep.subr.bf16.mxu0 0
        %2230 = vmatpush2.bf16.msra.mxu0 0
        %2231 = vmatprep.subr.bf16.mxu0 0
        %2232 = vmatpush2.bf16.msra.mxu0 0
        %2233 = vmatprep.subr.bf16.mxu0 0
        %2234 = vmatpush2.bf16.msra.mxu0 0
        %2235 = vmatprep.subr.bf16.mxu0 0
        %2236 = vmatpush2.bf16.msra.mxu0 0
        %2237 = vmatprep.subr.bf16.mxu0 0
        %2238 = vmatpush2.bf16.msra.mxu0 0
        %2239 = vmatprep.mubr.bf16.mxu0 0
        %2240 = vmatmul.mubr.bf16.gmra.mxu0 %v2142
        %v2241 = vpop.f32.mrf.mxu0
        %v2242 = vadd.f32 0.0, %v2241
        %v2243 = vpop.f32.mrf.mxu0
        %v2244 = vpop.f32.mrf.mxu0
        %v2245 = vadd.f32 0.0, %v2244
        %v2246 = vpop.f32.mrf.mxu0
        %2247 = vdwg.mxu0
        %v2248 = vadd.f32 %v1986, %v2242
        %v2249 = vadd.f32 %v1987, %v2245
        %v2250 = vlaneseq
        %v2251 = vshrl.u32 %v2250, 7
        %v2252 = vsub.s32 6, %v2251
        %v2253 = vrot.slane %v578, %v2252
        %v2254 = vadd.f32 %v2248, %v2253
        %v2255 = vadd.f32 %v2249, %v2253
        %p2256 = scmp.lt.s32.totalorder %s36, 1
        // Predicated region
        $region85: #{tpu_custom_call.1} parent=55 // pred_check
          %p2257 = pneg %p2256
        $region86: #{tpu_custom_call.1} parent=55 // pred_check_branch
          %2259 = sbr.rel (%p2257) target = $region88
        $region87: #{tpu_custom_call.1} parent=55 // pred_region
          %2260 = vst [vmem:[#allocation13] sm:$0xff] %v2254
          %2261 = vst [vmem:[#allocation13 + $0x8] sm:$0xff] %v2255
        $region88: #{tpu_custom_call.1} parent=55 // pred_fallthru
          _
        %p2262 = scmp.eq.s32.totalorder %s36, 1
        // Predicated region
        $region89: #{tpu_custom_call.1} parent=55 // pred_check
          %p2263 = pneg %p2262
        $region90: #{tpu_custom_call.1} parent=55 // pred_check_branch
          %2265 = sbr.rel (%p2263) target = $region92
        $region91: #{tpu_custom_call.1} parent=55 // pred_region
          %v2266 = vld [vmem:[%s8] sm:$0x3]
          %2267 = vadd.xlane.f32.xlu0 %v2254
          %v2268 = vpop.xlane.xlu0 %2267
          %2269 = vadd.xlane.f32.xlu0 %v2255
          %v2270 = vpop.xlane.xlu0 %2269
          %v2271 = vmul.f32 %v2268, %v585
          %v2272 = vmul.f32 %v2270, %v585
          %v2273 = vsub.f32 %v2254, %v2271
          %v2274 = vsub.f32 %v2255, %v2272
          %v2275 = vmul.f32 %v2273, %v2273
          %v2276 = vmul.f32 %v2274, %v2274
          %2277 = vadd.xlane.f32.xlu0 %v2275
          %v2278 = vpop.xlane.xlu0 %2277
          %2279 = vadd.xlane.f32.xlu0 %v2276
          %v2280 = vpop.xlane.xlu0 %2279
          %v2281 = vmul.f32 %v2278, %v585
          %v2282 = vmul.f32 %v2280, %v585
          %v2283 = vadd.f32 %v2281, 1e-05
          %v2284 = vadd.f32 %v2282, 1e-05
          %v2285 = vrsqrt.pop %v2283
          %v2286 = vrsqrt.pop %v2284
          %v2287 = vmul.f32 %v2273, %v2285
          %v2288 = vmul.f32 %v2274, %v2286
          %v2289 = vlaneseq
          %v2290 = vshrl.u32 %v2289, 7
          %v2291 = vsub.s32 0, %v2290
          %v2292 = vrot.slane %v2266, %v2291
          %v2293 = vmul.f32 %v2287, %v2292
          %v2294 = vmul.f32 %v2288, %v2292
          %v2295 = vlaneseq
          %v2296 = vshrl.u32 %v2295, 7
          %v2297 = vsub.s32 1, %v2296
          %v2298 = vrot.slane %v2266, %v2297
          %v2299 = vadd.f32 %v2293, %v2298
          %v2300 = vadd.f32 %v2294, %v2298
          %2301 = vst [vmem:[#allocation13] sm:$0xff] %v2299
          %2302 = vst [vmem:[#allocation13 + $0x8] sm:$0xff] %v2300
        $region92: #{tpu_custom_call.1} parent=55 // pred_fallthru
          _
        // Predicated region
        $region93: #{tpu_custom_call.1} parent=55 // pred_check
          %p2303 = pneg %p290
        $region94: #{tpu_custom_call.1} parent=55 // pred_check_branch
          %2305 = sbr.rel (%p2303) target = $region96
        $region95: #{tpu_custom_call.1} parent=55 // pred_region
          %s2306 = smul.u32 2, %s35
          %s2308 = ssub.s32 256, 256
          %2309 = vsyncadd [#allocation4], %s2308
          %s2310 = smul.addr %s2306, 128
          %s2311 = scalar_lea.hbm %s9, %s2310
          %s2312 = sshll.u32 [#allocation13], 4
          %s2313 = int_to_ptr.vmem [resolvable:$true] %s2312
          %2318 = dma.vmem_to_hbm [thread:$0]  %s2313, 256, %s2311, [#allocation4], 128, 128, 8
        $region96: #{tpu_custom_call.1} parent=55 // pred_fallthru
          _
        // Predicated region
        $region97: #{tpu_custom_call.1} parent=55 // pred_check
          %p2319 = pneg %p290
        $region98: #{tpu_custom_call.1} parent=55 // pred_check_branch
          %2321 = sbr.rel (%p2319) target = $region100
        $region99: #{tpu_custom_call.1} parent=55 // pred_region
          %2322 = dma.done [#allocation4], 256
        $region100: #{tpu_custom_call.1} parent=55 // pred_fallthru
          _
      $region56: #{tpu_custom_call.1} parent=5 // pred_fallthru
        _
      %p2323 = scmp.le.s32.totalorder 2, %s26
      // Predicated region
      $region101: #{tpu_custom_call.1} parent=5 // pred_check
        %p2324 = pneg %p2323
      $region102: #{tpu_custom_call.1} parent=5 // pred_check_branch
        %2326 = sbr.rel (%p2324) target = $region104
      $region103: #{tpu_custom_call.1} parent=5 // pred_region
        %s2327 = ssub.s32 %s26, 2
      $region104: #{tpu_custom_call.1} parent=5 // pred_fallthru
        _
    $region6: #{tpu_custom_call.1} parent=1 // loop_footer
      %s30 = sadd.s32 1, %s26
    $region7: #{tpu_custom_call.1} parent=1 // loop_footer_branch
      %25 = sbr.rel target = $region3
    $region8: #{tpu_custom_call.1} parent=1 // loop_exit
      _
    %2328 = vsyncpa [#allocation3], 1
    %s2329 = scalar_lea.sflag [#allocation3], 1
    %2330 = vsyncpa %s2329, 1
    %2331 = vsyncpa [#allocation6], 1
    %s2332 = scalar_lea.sflag [#allocation6], 1
    %2333 = vsyncpa %s2332, 1
    %2334 = vsyncpa [#allocation9], 1
    %s2335 = scalar_lea.sflag [#allocation9], 1
    %2336 = vsyncpa %s2335, 1
    %2337 = vsyncpa [#allocation12], 1
    %s2338 = scalar_lea.sflag [#allocation12], 1
    %2339 = vsyncpa %s2338, 1
    %2340 = vsyncpa [#allocation4], 1
    %s2341 = scalar_lea.sflag [#allocation4], 1
    %2342 = vsyncpa %s2341, 1

</llo_original>
